<compile_context>
chip_gen: v7x
topology: tpu7x:2x2x1
jax: 0.10.0
libtpu: 0.0.40
codegen_flags: <defaults>
</compile_context>

<pallas_src>
import functools

import jax
import jax.numpy as jnp
from jax.experimental import pallas as pl
from jax.experimental.pallas import tpu as pltpu

HIDDEN = 32   # hidden width of the synthetic SDF MLP
IN_DIM = 3    # xyz world coordinates
OUT_DIM = 2   # [sdf, const_feat]
LANE = 128    # TPU lane width


def _round_up(x, m):
    return ((x + m - 1) // m) * m


def _has_bf16_vpu():
    """v6e/v7x VALUs are bf16-capable; v5e (and older) are not."""
    try:
        kind = jax.devices()[0].device_kind.lower()
    except Exception:
        return True
    return not any(v in kind for v in ("v2", "v3", "v4", "v5"))


def _relu_to_bf16(x_f32, bf16_relu):
    # max(x, 0) commutes with the monotone bf16 cast, so both orders are
    # numerically equivalent; the bf16-first order halves VALU vregs on
    # chips with a bf16 VPU.
    if bf16_relu:
        return jnp.maximum(x_f32.astype(jnp.bfloat16), 0)
    return jnp.maximum(x_f32, 0.0).astype(jnp.bfloat16)


def _sdf_mlp_kernel(x_ref, w1a_ref, w2t_ref, w3t_ref, bias_ref, out_ref, *,
                    bf16_relu):
    # x_ref:   (4, tm) bf16  — rows 0..2 = xyz on sublanes, row 3 = ones
    # w1a_ref: (H, 4)  bf16  — [W1^T | b1]   (bias folded into the MXU)
    # w2t_ref: (H, H)  bf16  — W2^T
    # w3t_ref: (1, H)  bf16  — W3^T
    # bias_ref:(H, 2)  f32   — col 0 = b2, [0, 1] = b3
    # out_ref: (2, tm) f32   — row 0 = sdf, row 1 = const 0.5 feature
    x = x_ref[...]

    # layer 1 (+ bias, folded): (H, 4) @ (4, tm) -> (H, tm), f32 accumulate
    h1 = jnp.dot(w1a_ref[...], x, preferred_element_type=jnp.float32)
    h1b = _relu_to_bf16(h1, bf16_relu)                              # (H, tm) bf16

    # layer 2: (H, H) @ (H, tm) -> (H, tm), f32 accumulate, + b2
    h2 = jnp.dot(w2t_ref[...], h1b,
                 preferred_element_type=jnp.float32) + bias_ref[:, 0:1]
    h2b = _relu_to_bf16(h2, bf16_relu)                              # (H, tm) bf16

    # tail projection (H -> 1) on the MXU: (1, H) @ (H, tm) -> (1, tm), + b3
    sdf = jnp.dot(w3t_ref[...], h2b,
                  preferred_element_type=jnp.float32) + bias_ref[0:1, 1:2]

    out_ref[0:1, :] = sdf.astype(out_ref.dtype)
    out_ref[1:2, :] = jnp.full(sdf.shape, 0.5, dtype=out_ref.dtype)


@functools.partial(jax.jit, static_argnames=("tm",))
def model_wrapper_forward(rays_points_world, params, *, tm=16384):
    """Pallas equivalent of ModelWrapper.forward(rays_points_world=...)."""
    w1, b1, w2, b2, w3, b3 = params
    n, d = rays_points_world.shape
    assert d == IN_DIM
    h = w1.shape[1]

    # --- tile selection -------------------------------------------------
    # Big tiles amortize the ~0.35us/step grid overhead; default tm=16384
    # keeps per-step VMEM (~6-7 MiB incl. the (H, tm) f32 temps) inside
    # v5e's 16 MiB scoped-VMEM default. Keep >=2 grid steps so both v7x
    # TensorCores are fed via dimension_semantics=("parallel",).
    tm = _round_up(max(int(tm), LANE), LANE)
    n_lane = _round_up(n, LANE)
    if n_lane > LANE:
        tm = min(tm, _round_up(pl.cdiv(n_lane, 2), LANE))
    else:
        tm = min(tm, n_lane)
    n_pad = _round_up(n_lane, tm)

    # --- layout plumbing (fused into this jit, outside the hot loop) -----
    x_t = rays_points_world.T.astype(jnp.bfloat16)                  # (3, N)
    ones_row = jnp.ones((1, n), jnp.bfloat16)                       # bias row
    x4 = jnp.concatenate([x_t, ones_row], axis=0)                   # (4, N)
    if n_pad != n:
        x4 = jnp.pad(x4, ((0, 0), (0, n_pad - n)))                  # padded cols -> garbage sdf, sliced off

    w1a = jnp.concatenate([w1.T, b1.reshape(h, 1)],
                          axis=1).astype(jnp.bfloat16)              # (H, 4) = [W1^T | b1]
    w2_t = w2.T.astype(jnp.bfloat16)                                # (H, H)
    w3_t = w3.reshape(1, h).astype(jnp.bfloat16)                    # (1, H)
    b3_col = jnp.zeros((h, 1), jnp.float32).at[0, 0].set(
        b3.reshape(()).astype(jnp.float32))
    bias_pack = jnp.concatenate(
        [b2.reshape(h, 1).astype(jnp.float32), b3_col], axis=1)     # (H, 2)

    grid = (n_pad // tm,)
    kernel = functools.partial(_sdf_mlp_kernel, bf16_relu=_has_bf16_vpu())

    out2 = pl.pallas_call(
        kernel,
        out_shape=jax.ShapeDtypeStruct((OUT_DIM, n_pad), jnp.float32),
        grid_spec=pltpu.PrefetchScalarGridSpec(
            num_scalar_prefetch=0,
            grid=grid,
            in_specs=[
                pl.BlockSpec((d + 1, tm), lambda i: (0, i)),   # points (+ones): lane-tiled over N
                pl.BlockSpec((h, d + 1), lambda i: (0, 0)),    # [W1^T | b1] (resident)
                pl.BlockSpec((h, h), lambda i: (0, 0)),        # W2^T
                pl.BlockSpec((1, h), lambda i: (0, 0)),        # W3^T
                pl.BlockSpec((h, 2), lambda i: (0, 0)),        # packed b2 / b3
            ],
            out_specs=pl.BlockSpec((OUT_DIM, tm), lambda i: (0, i)),  # lane-dense [sdf; 0.5] slab
        ),
        compiler_params=pltpu.CompilerParams(
            dimension_semantics=("parallel",),
        ),
    )(x4, w1a, w2_t, w3_t, bias_pack)

    # (2, n_pad) -> (N, 2); fuses with the kernel output copy under jit.
    return out2[:, :n].T


def init_params(key, in_dim=IN_DIM, hidden=HIDDEN):
    """Deterministic synthetic parameters for the wrapped SDF MLP."""
    k1, k2, k3 = jax.random.split(key, 3)
    w1 = jax.random.normal(k1, (in_dim, hidden), jnp.float32) * 0.3
    b1 = jnp.zeros((1, hidden), jnp.float32)
    w2 = jax.random.normal(k2, (hidden, hidden), jnp.float32) * 0.3
    b2 = jnp.zeros((1, hidden), jnp.float32)
    w3 = jax.random.normal(k3, (hidden, 1), jnp.float32) * 0.3
    b3 = jnp.zeros((1, 1), jnp.float32)
    return (w1, b1, w2, b2, w3, b3)


def reference_forward(points, params):
    """Pure-JAX (f32) reference mirroring the PyTorch ModelWrapper semantics."""
    w1, b1, w2, b2, w3, b3 = params
    h1 = jnp.maximum(points @ w1 + b1, 0.0)
    h2 = jnp.maximum(h1 @ w2 + b2, 0.0)
    sdf = h2 @ w3 + b3                                   # (N, 1)
    feats = jnp.full((sdf.shape[0], 1), 0.5, sdf.dtype)  # (N, 1)
    return jnp.concatenate([sdf, feats], axis=-1)        # (N, 2)


if __name__ == "__main__":
    key = jax.random.PRNGKey(0)
    k_pts, k_params = jax.random.split(key)

    # 4096 world points, 3 coords each; tm=2048 -> grid of 2 (feeds both v7x
    # TensorCores; neutral on v5e/v6e).
    N = 4096
    rays_points_world = jax.random.normal(k_pts, (N, IN_DIM), jnp.float32)
    params = init_params(k_params)

    out = model_wrapper_forward(rays_points_world, params, tm=2048)
    out = jax.block_until_ready(out)

    ref = reference_forward(rays_points_world, params)
    assert out.shape == (N, OUT_DIM)
    # bf16 MXU inputs / bf16 intermediates with f32 accumulation -> small
    # (<~1e-2 at unit-scale points) deviation vs the f32 reference.
    assert jnp.allclose(out, ref, atol=5e-2, rtol=5e-2), "mismatch vs pure-JAX reference"

    print("KERNEL_OK")
</pallas_src>

<mosaic_0001>
module attributes {stable_mosaic.version = 11 : i64} {
  func.func @_sdf_mlp_kernel(%arg0: i32, %arg1: memref<4x2048xbf16, #tpu.memory_space<vmem>>, %arg2: memref<32x4xbf16, #tpu.memory_space<vmem>>, %arg3: memref<32x32xbf16, #tpu.memory_space<vmem>>, %arg4: memref<1x32xbf16, #tpu.memory_space<vmem>>, %arg5: memref<32x2xf32, #tpu.memory_space<vmem>>, %arg6: memref<2x2048xf32, #tpu.memory_space<vmem>>) attributes {dimension_semantics = [#tpu.dimension_semantics<parallel>], iteration_bounds = array<i64: 2>, scalar_prefetch = 0 : i64, scratch_operands = 0 : i64, tpu.core_type = #tpu.core_type<tc>, window_params = [{transform_indices = @transform_0, window_bounds = array<i64: 4, 2048>}, {pipeline_mode = #tpu.pipeline_mode<synchronous>, transform_indices = @transform_1, window_bounds = array<i64: 32, 4>}, {pipeline_mode = #tpu.pipeline_mode<synchronous>, transform_indices = @transform_2, window_bounds = array<i64: 32, 32>}, {pipeline_mode = #tpu.pipeline_mode<synchronous>, transform_indices = @transform_3, window_bounds = array<i64: 1, 32>}, {pipeline_mode = #tpu.pipeline_mode<synchronous>, transform_indices = @transform_4, window_bounds = array<i64: 32, 2>}, {transform_indices = @transform_5, window_bounds = array<i64: 2, 2048>}]} {
    %c0 = arith.constant 0 : index
    %c0_0 = arith.constant 0 : index
    %0 = vector.load %arg1[%c0, %c0_0] : memref<4x2048xbf16, #tpu.memory_space<vmem>>, vector<4x2048xbf16>
    %c0_1 = arith.constant 0 : index
    %c0_2 = arith.constant 0 : index
    %1 = vector.load %arg2[%c0_1, %c0_2] : memref<32x4xbf16, #tpu.memory_space<vmem>>, vector<32x4xbf16>
    %cst = arith.constant dense<0.000000e+00> : vector<32x2048xf32>
    %2 = tpu.matmul %1, %0, %cst {dimension_numbers = #tpu.dot_dimension_numbers<[1], [0], [0], [1], [0, 0, 1, 1], [], []>} : vector<32x4xbf16>, vector<4x2048xbf16>, vector<32x2048xf32> -> vector<32x2048xf32>
    %3 = arith.truncf %2 : vector<32x2048xf32> to vector<32x2048xbf16>
    %cst_3 = arith.constant 0.000000e+00 : bf16
    %4 = vector.broadcast %cst_3 : bf16 to vector<32x2048xbf16>
    %5 = arith.maximumf %3, %4 : vector<32x2048xbf16>
    %c0_4 = arith.constant 0 : index
    %c0_5 = arith.constant 0 : index
    %6 = vector.load %arg3[%c0_4, %c0_5] : memref<32x32xbf16, #tpu.memory_space<vmem>>, vector<32x32xbf16>
    %cst_6 = arith.constant dense<0.000000e+00> : vector<32x2048xf32>
    %7 = tpu.matmul %6, %5, %cst_6 {dimension_numbers = #tpu.dot_dimension_numbers<[1], [0], [0], [1], [0, 0, 1, 1], [], []>} : vector<32x32xbf16>, vector<32x2048xbf16>, vector<32x2048xf32> -> vector<32x2048xf32>
    %c0_7 = arith.constant 0 : index
    %c0_8 = arith.constant 0 : index
    %8 = vector.load %arg5[%c0_7, %c0_8] : memref<32x2xf32, #tpu.memory_space<vmem>>, vector<32x1xf32>
    %9 = vector.broadcast %8 : vector<32x1xf32> to vector<32x2048xf32>
    %10 = arith.addf %7, %9 : vector<32x2048xf32>
    %11 = arith.truncf %10 : vector<32x2048xf32> to vector<32x2048xbf16>
    %cst_9 = arith.constant 0.000000e+00 : bf16
    %12 = vector.broadcast %cst_9 : bf16 to vector<32x2048xbf16>
    %13 = arith.maximumf %11, %12 : vector<32x2048xbf16>
    %c0_10 = arith.constant 0 : index
    %c0_11 = arith.constant 0 : index
    %14 = vector.load %arg4[%c0_10, %c0_11] : memref<1x32xbf16, #tpu.memory_space<vmem>>, vector<1x32xbf16>
    %cst_12 = arith.constant dense<0.000000e+00> : vector<1x2048xf32>
    %15 = tpu.matmul %14, %13, %cst_12 {dimension_numbers = #tpu.dot_dimension_numbers<[1], [0], [0], [1], [0, 0, 1, 1], [], []>} : vector<1x32xbf16>, vector<32x2048xbf16>, vector<1x2048xf32> -> vector<1x2048xf32>
    %c0_13 = arith.constant 0 : index
    %c1 = arith.constant 1 : index
    %16 = vector.load %arg5[%c0_13, %c1] : memref<32x2xf32, #tpu.memory_space<vmem>>, vector<1x1xf32>
    %17 = vector.broadcast %16 : vector<1x1xf32> to vector<1x2048xf32>
    %18 = arith.addf %15, %17 : vector<1x2048xf32>
    %c0_14 = arith.constant 0 : index
    %c0_15 = arith.constant 0 : index
    %19 = vector.load %arg6[%c0_14, %c0_15] : memref<2x2048xf32, #tpu.memory_space<vmem>>, vector<1x2048xf32>
    tpu.vector_store %arg6[%c0_14, %c0_15], %18 {strides = array<i32>} : memref<2x2048xf32, #tpu.memory_space<vmem>>, vector<1x2048xf32>,
    %cst_16 = arith.constant 5.000000e-01 : f32
    %20 = vector.broadcast %cst_16 : f32 to vector<1x2048xf32>
    %c1_17 = arith.constant 1 : index
    %c0_18 = arith.constant 0 : index
    %21 = vector.load %arg6[%c1_17, %c0_18] : memref<2x2048xf32, #tpu.memory_space<vmem>>, vector<1x2048xf32>
    tpu.vector_store %arg6[%c1_17, %c0_18], %20 {strides = array<i32>} : memref<2x2048xf32, #tpu.memory_space<vmem>>, vector<1x2048xf32>,
    return
  }
  func.func @transform_0(%arg0: i32) -> (i32, i32) {
    %c0_i32 = arith.constant 0 : i32
    %c0_i32_0 = arith.constant 0 : i32
    return %c0_i32, %arg0 : i32, i32
  }
  func.func @transform_1(%arg0: i32) -> (i32, i32) {
    %c0_i32 = arith.constant 0 : i32
    %c0_i32_0 = arith.constant 0 : i32
    %c0_i32_1 = arith.constant 0 : i32
    return %c0_i32, %c0_i32_0 : i32, i32
  }
  func.func @transform_2(%arg0: i32) -> (i32, i32) {
    %c0_i32 = arith.constant 0 : i32
    %c0_i32_0 = arith.constant 0 : i32
    %c0_i32_1 = arith.constant 0 : i32
    return %c0_i32, %c0_i32_0 : i32, i32
  }
  func.func @transform_3(%arg0: i32) -> (i32, i32) {
    %c0_i32 = arith.constant 0 : i32
    %c0_i32_0 = arith.constant 0 : i32
    %c0_i32_1 = arith.constant 0 : i32
    return %c0_i32, %c0_i32_0 : i32, i32
  }
  func.func @transform_4(%arg0: i32) -> (i32, i32) {
    %c0_i32 = arith.constant 0 : i32
    %c0_i32_0 = arith.constant 0 : i32
    %c0_i32_1 = arith.constant 0 : i32
    return %c0_i32, %c0_i32_0 : i32, i32
  }
  func.func @transform_5(%arg0: i32) -> (i32, i32) {
    %c0_i32 = arith.constant 0 : i32
    %c0_i32_0 = arith.constant 0 : i32
    return %c0_i32, %arg0 : i32, i32
  }
}

</mosaic_0001>

<llo_original>
// kernel: model_wrapper_forward.1
$region0: #{model_wrapper_forward.1}
  #allocation0 [shape = 'u32[]', space=smem, size = 0x4, offset = 0x4, fixed_abs, tag = 'smem constant byte address 0x4 - core index']
  #allocation1 [shape = 'u32[144,128]{1,0:T(1,128)}', space=vmem, size = 0x12000, scoped, tag = 'internal scratch']
  %s0 = inlined_call_operand.vmem [shape: bf16[4,4096], index: 0, kind: input, shape index: {}]
  %s1 = inlined_call_operand.vmem [shape: bf16[32,4], index: 1, kind: input, shape index: {}]
  %s2 = inlined_call_operand.vmem [shape: bf16[32,32], index: 2, kind: input, shape index: {}]
  %s3 = inlined_call_operand.vmem [shape: bf16[1,32], index: 3, kind: input, shape index: {}]
  %s4 = inlined_call_operand.vmem [shape: f32[32,2], index: 4, kind: input, shape index: {}]
  %s5 = inlined_call_operand.hbm [shape: f32[2,4096], index: 5, kind: output, shape index: {}]
  %s6 = sld [smem:[#allocation0]]
  $region53: #{model_wrapper_forward.1} parent=0
    _
  %s8 = ssub.s32 1, %s6
  %s9 = scalar_select 0, %s8, %s6
  $region1: #{model_wrapper_forward.1} parent=0
    #allocation2 [shape = 'u8[32768]{0}', space=vmem, size = 0x8000, scoped, tag = 'output window, operand 0']
    #allocation3 [shape = 's32[2]{0}', space=sflag, size = 0x8, scoped, tag = 'scoped memory for model_wrapper_forward.1']
    %10 = vsyncpa [#allocation3], 0
    %s11 = scalar_lea.sflag [#allocation3], 1
    %12 = vsyncpa %s11, 0
    loop: start=0, step=1, limit=4
    $region2: #{model_wrapper_forward.1} parent=1 // loop_pre_header
      _
    $region3: #{model_wrapper_forward.1} parent=1 // loop_header
      %s14 = sphi 0, %s18
      %p15 = scmp.ge.s32.totalorder %s14, 4
      %s24 = sphi 0, %s26
      %s27 = sphi 0, %s24
      %s28 = sphi 0, %s27
      %s44 = sphi 0, %s28
      %s48 = sphi 0, %s48
      %s50 = sphi 0, %s48
      %s51 = sphi 0, %s50
      %s65 = sphi 0, %s51
      %s69 = sphi 0, %s69
      %s71 = sphi 0, %s69
      %s72 = sphi 0, %s71
      %s86 = sphi 0, %s72
      %s90 = sphi 0, %s90
      %s92 = sphi 0, %s90
      %s93 = sphi 0, %s92
      %s107 = sphi 0, %s93
      %s111 = sphi 0, %s111
      %s113 = sphi 0, %s111
      %s114 = sphi 0, %s113
      %s128 = sphi 0, %s114
      %s134 = sphi 0, %s136
      %s137 = sphi 0, %s134
      %s138 = sphi 0, %s137
      %s154 = sphi 0, %s138
    $region4: #{model_wrapper_forward.1} parent=1 // loop_header_branch
      %17 = sbr.rel (%p15) target = $region8
    $region5: #{model_wrapper_forward.1} parent=1 // loop_body
      %s19 = ssub.s32 %s14, 1
      %s20 = ssub.s32 %s14, 2
      %s21 = sadd.s32 %s14, 1
      %s22 = ssub.s32 %s14, %s21
      %p23 = scmp.eq.s32.totalorder %s22, 0
      %s25 = sadd.s32 %s24, 1
      %s26 = scalar_select %p23, %s24, %s25
      %p29 = pneg %p23
      %p30 = scmp.eq.s32.totalorder %s14, 1
      %p31 = por %p29, %p30
      %p32 = scmp.ne.s32.totalorder %s24, %s27
      %p33 = scmp.eq.s32.totalorder %s14, 0
      %p34 = por %p32, %p33
      %p35 = scmp.ne.s32.totalorder %s24, %s27
      %p36 = scmp.eq.s32.totalorder %s19, 1
      %p37 = por %p35, %p36
      %p38 = scmp.ne.s32.totalorder %s27, %s28
      %p39 = scmp.eq.s32.totalorder %s19, 0
      %p40 = por %p38, %p39
      %p41 = scmp.ne.s32.totalorder %s27, %s28
      %p42 = scmp.eq.s32.totalorder %s20, 1
      %p43 = por %p41, %p42
      %p45 = scmp.ne.s32.totalorder %s28, %s44
      %p46 = scmp.eq.s32.totalorder %s20, 0
      %p47 = por %p45, %p46
      %s49 = sadd.s32 %s48, 1
      %p52 = scmp.eq.s32.totalorder %s14, 1
      %p53 = scmp.ne.s32.totalorder %s48, %s50
      %p54 = scmp.eq.s32.totalorder %s14, 0
      %p55 = por %p53, %p54
      %p56 = scmp.ne.s32.totalorder %s48, %s50
      %p57 = scmp.eq.s32.totalorder %s19, 1
      %p58 = por %p56, %p57
      %p59 = scmp.ne.s32.totalorder %s50, %s51
      %p60 = scmp.eq.s32.totalorder %s19, 0
      %p61 = por %p59, %p60
      %p62 = scmp.ne.s32.totalorder %s50, %s51
      %p63 = scmp.eq.s32.totalorder %s20, 1
      %p64 = por %p62, %p63
      %p66 = scmp.ne.s32.totalorder %s51, %s65
      %p67 = scmp.eq.s32.totalorder %s20, 0
      %p68 = por %p66, %p67
      %s70 = sadd.s32 %s69, 1
      %p73 = scmp.eq.s32.totalorder %s14, 1
      %p74 = scmp.ne.s32.totalorder %s69, %s71
      %p75 = scmp.eq.s32.totalorder %s14, 0
      %p76 = por %p74, %p75
      %p77 = scmp.ne.s32.totalorder %s69, %s71
      %p78 = scmp.eq.s32.totalorder %s19, 1
      %p79 = por %p77, %p78
      %p80 = scmp.ne.s32.totalorder %s71, %s72
      %p81 = scmp.eq.s32.totalorder %s19, 0
      %p82 = por %p80, %p81
      %p83 = scmp.ne.s32.totalorder %s71, %s72
      %p84 = scmp.eq.s32.totalorder %s20, 1
      %p85 = por %p83, %p84
      %p87 = scmp.ne.s32.totalorder %s72, %s86
      %p88 = scmp.eq.s32.totalorder %s20, 0
      %p89 = por %p87, %p88
      %s91 = sadd.s32 %s90, 1
      %p94 = scmp.eq.s32.totalorder %s14, 1
      %p95 = scmp.ne.s32.totalorder %s90, %s92
      %p96 = scmp.eq.s32.totalorder %s14, 0
      %p97 = por %p95, %p96
      %p98 = scmp.ne.s32.totalorder %s90, %s92
      %p99 = scmp.eq.s32.totalorder %s19, 1
      %p100 = por %p98, %p99
      %p101 = scmp.ne.s32.totalorder %s92, %s93
      %p102 = scmp.eq.s32.totalorder %s19, 0
      %p103 = por %p101, %p102
      %p104 = scmp.ne.s32.totalorder %s92, %s93
      %p105 = scmp.eq.s32.totalorder %s20, 1
      %p106 = por %p104, %p105
      %p108 = scmp.ne.s32.totalorder %s93, %s107
      %p109 = scmp.eq.s32.totalorder %s20, 0
      %p110 = por %p108, %p109
      %s112 = sadd.s32 %s111, 1
      %p115 = scmp.eq.s32.totalorder %s14, 1
      %p116 = scmp.ne.s32.totalorder %s111, %s113
      %p117 = scmp.eq.s32.totalorder %s14, 0
      %p118 = por %p116, %p117
      %p119 = scmp.ne.s32.totalorder %s111, %s113
      %p120 = scmp.eq.s32.totalorder %s19, 1
      %p121 = por %p119, %p120
      %p122 = scmp.ne.s32.totalorder %s113, %s114
      %p123 = scmp.eq.s32.totalorder %s19, 0
      %p124 = por %p122, %p123
      %p125 = scmp.ne.s32.totalorder %s113, %s114
      %p126 = scmp.eq.s32.totalorder %s20, 1
      %p127 = por %p125, %p126
      %p129 = scmp.ne.s32.totalorder %s114, %s128
      %p130 = scmp.eq.s32.totalorder %s20, 0
      %p131 = por %p129, %p130
      %s132 = ssub.s32 %s14, %s21
      %p133 = scmp.eq.s32.totalorder %s132, 0
      %s135 = sadd.s32 %s134, 1
      %s136 = scalar_select %p133, %s134, %s135
      %p139 = pneg %p133
      %p140 = scmp.eq.s32.totalorder %s14, 1
      %p141 = por %p139, %p140
      %p142 = scmp.ne.s32.totalorder %s134, %s137
      %p143 = scmp.eq.s32.totalorder %s14, 0
      %p144 = por %p142, %p143
      %p145 = scmp.ne.s32.totalorder %s134, %s137
      %p146 = scmp.eq.s32.totalorder %s19, 1
      %p147 = por %p145, %p146
      %p148 = scmp.ne.s32.totalorder %s137, %s138
      %p149 = scmp.eq.s32.totalorder %s19, 0
      %p150 = por %p148, %p149
      %p151 = scmp.ne.s32.totalorder %s137, %s138
      %p152 = scmp.eq.s32.totalorder %s20, 1
      %p153 = por %p151, %p152
      %p155 = scmp.ne.s32.totalorder %s138, %s154
      %p156 = scmp.eq.s32.totalorder %s20, 0
      %p157 = por %p155, %p156
      %p158 = scmp.le.s32.totalorder 1, %s14
      %p159 = scmp.lt.s32.totalorder %s14, 3
      %p160 = pnand %p158, %p159
      %p161 = pneg %p160
      // Predicated region
      $region9: #{model_wrapper_forward.1} parent=5 // pred_check
        _
      $region10: #{model_wrapper_forward.1} parent=5 // pred_check_branch
        %163 = sbr.rel (%p160) target = $region12
      $region11: #{model_wrapper_forward.1} parent=5 // pred_region
        %s164 = ssub.s32 %s14, 1
        // Predicated region
        $region13: #{model_wrapper_forward.1} parent=11 // pred_check
          %p165 = pneg %p61
        $region14: #{model_wrapper_forward.1} parent=11 // pred_check_branch
          %167 = sbr.rel (%p165) target = $region16
        $region15: #{model_wrapper_forward.1} parent=11 // pred_region
          _
        $region16: #{model_wrapper_forward.1} parent=11 // pred_fallthru
          _
        // Predicated region
        $region17: #{model_wrapper_forward.1} parent=11 // pred_check
          %p168 = pneg %p82
        $region18: #{model_wrapper_forward.1} parent=11 // pred_check_branch
          %170 = sbr.rel (%p168) target = $region20
        $region19: #{model_wrapper_forward.1} parent=11 // pred_region
          _
        $region20: #{model_wrapper_forward.1} parent=11 // pred_fallthru
          _
        // Predicated region
        $region21: #{model_wrapper_forward.1} parent=11 // pred_check
          %p171 = pneg %p103
        $region22: #{model_wrapper_forward.1} parent=11 // pred_check_branch
          %173 = sbr.rel (%p171) target = $region24
        $region23: #{model_wrapper_forward.1} parent=11 // pred_region
          _
        $region24: #{model_wrapper_forward.1} parent=11 // pred_fallthru
          _
        // Predicated region
        $region25: #{model_wrapper_forward.1} parent=11 // pred_check
          %p174 = pneg %p124
        $region26: #{model_wrapper_forward.1} parent=11 // pred_check_branch
          %176 = sbr.rel (%p174) target = $region28
        $region27: #{model_wrapper_forward.1} parent=11 // pred_region
          _
        $region28: #{model_wrapper_forward.1} parent=11 // pred_fallthru
          _
      $region12: #{model_wrapper_forward.1} parent=5 // pred_fallthru
        _
      %p177 = scmp.lt.s32.totalorder %s14, 2
      // Predicated region
      $region29: #{model_wrapper_forward.1} parent=5 // pred_check
        %p178 = pneg %p177
      $region30: #{model_wrapper_forward.1} parent=5 // pred_check_branch
        %180 = sbr.rel (%p178) target = $region32
      $region31: #{model_wrapper_forward.1} parent=5 // pred_region
        // Predicated region
        $region33: #{model_wrapper_forward.1} parent=31 // pred_check
          %p181 = pneg %p34
        $region34: #{model_wrapper_forward.1} parent=31 // pred_check_branch
          %183 = sbr.rel (%p181) target = $region36
        $region35: #{model_wrapper_forward.1} parent=31 // pred_region
          %s184 = smul.u32 16, %s14
          %p185 = scmp.lt.s32.totalorder %s184, 31
          %s186 = scalar_select %p185, %s184, 31
          %s187 = smul.addr %s186, 2
          %s188 = scalar_lea.vmem %s0, %s187
          %s189 = smul.u32 16, %s14
        $region36: #{model_wrapper_forward.1} parent=31 // pred_fallthru
          _
      $region32: #{model_wrapper_forward.1} parent=5 // pred_fallthru
        _
      %p190 = scmp.le.s32.totalorder 1, %s14
      %p191 = scmp.lt.s32.totalorder %s14, 3
      %p192 = pnand %p190, %p191
      %p193 = pneg %p192
      // Predicated region
      $region37: #{model_wrapper_forward.1} parent=5 // pred_check
        _
      $region38: #{model_wrapper_forward.1} parent=5 // pred_check_branch
        %195 = sbr.rel (%p192) target = $region40
      $region39: #{model_wrapper_forward.1} parent=5 // pred_region
        %s196 = ssub.s32 %s14, 1
        %s197 = smul.u32 16, %s19
        %p198 = scmp.lt.s32.totalorder %s197, 31
        %s199 = scalar_select %p198, %s197, 31
        %s200 = smul.addr %s199, 2
        %s201 = scalar_lea.vmem %s0, %s200
        %p202 = pneg %p40
        %p203 = pneg %p37
        %p204 = pneg %p61
        %p205 = pneg %p58
        %p206 = pneg %p82
        %p207 = pneg %p79
        %p208 = pneg %p103
        %p209 = pneg %p100
        %p210 = pneg %p124
        %p211 = pneg %p121
        %p212 = pneg %p150
        %p213 = pneg %p147
        %s214 = sand.u32 %s137, 1
        %s215 = scalar_lea.sflag [#allocation3], %s214
        %s216 = sand.u32 %s137, 1
        %s217 = smul.addr %s216, 32
        %s218 = scalar_lea.vmem [#allocation2], %s217
        %s219 = smul.u32 16, %s19
        %p220 = scmp.lt.s32.totalorder %s219, 31
        %s221 = scalar_select %p220, %s219, 31
        %s222 = smul.addr %s221, 2
        %s223 = scalar_lea.vmem %s0, %s222
        %s224 = smul.u32 16, %s19
        %s225 = smul.u32 16, %s19
        %v227 = vld [vmem:[%s223] sm:$0xff]
        %v228 = vld [vmem:[%s223 + $0x8] sm:$0xff]
        %v229 = vld [vmem:[%s223 + $0x10] sm:$0xff]
        %v230 = vld [vmem:[%s223 + $0x18] sm:$0xff]
        %v231 = vld [vmem:[%s1] sm:$0xf]
        %v232 = vld [vmem:[%s1 + $0x4] sm:$0xf]
        %v233 = vld [vmem:[%s1 + $0x8] sm:$0xf]
        %v234 = vld [vmem:[%s1 + $0xc] sm:$0xf]
        %v239 = vunpack.c.l.b16 %v231
        %v240 = vunpack.c.l.b16 %v232
        %v241 = vunpack.c.l.b16 %v233
        %v242 = vunpack.c.l.b16 %v234
        %v243 = vpack.c.b16 %v240, %v239
        %v244 = vpack.c.b16 %v242, %v241
        %v249 = vcombine.high %v227, %v227
        %v251 = vunpack.c.l.s4 1983009808
        %v252 = vunpack.c.0.s8 %v251
        %v253 = vlaneseq
        %v254 = vshrl.u32 %v253, 7
        %v255 = vsub.s32 %v252, %v254
        %v256 = vrot.slane %v227, %v255
        %v258 = vunpack.c.l.s4 1983009808
        %v259 = vunpack.c.0.s8 %v258
        %v260 = vlaneseq
        %v261 = vshrl.u32 %v260, 7
        %v262 = vsub.s32 %v259, %v261
        %v263 = vrot.slane %v249, %v262
        %v264 = vcombine.high %v256, %v256
        %v265 = vcombine.high %v263, %v263
        %v266 = vcombine.high %v228, %v228
        %v268 = vunpack.c.l.s4 1983009808
        %v269 = vunpack.c.0.s8 %v268
        %v270 = vlaneseq
        %v271 = vshrl.u32 %v270, 7
        %v272 = vsub.s32 %v269, %v271
        %v273 = vrot.slane %v228, %v272
        %v275 = vunpack.c.l.s4 1983009808
        %v276 = vunpack.c.0.s8 %v275
        %v277 = vlaneseq
        %v278 = vshrl.u32 %v277, 7
        %v279 = vsub.s32 %v276, %v278
        %v280 = vrot.slane %v266, %v279
        %v281 = vcombine.high %v273, %v273
        %v282 = vcombine.high %v280, %v280
        %v283 = vcombine.high %v229, %v229
        %v285 = vunpack.c.l.s4 1983009808
        %v286 = vunpack.c.0.s8 %v285
        %v287 = vlaneseq
        %v288 = vshrl.u32 %v287, 7
        %v289 = vsub.s32 %v286, %v288
        %v290 = vrot.slane %v229, %v289
        %v292 = vunpack.c.l.s4 1983009808
        %v293 = vunpack.c.0.s8 %v292
        %v294 = vlaneseq
        %v295 = vshrl.u32 %v294, 7
        %v296 = vsub.s32 %v293, %v295
        %v297 = vrot.slane %v283, %v296
        %v298 = vcombine.high %v290, %v290
        %v299 = vcombine.high %v297, %v297
        %v300 = vcombine.high %v230, %v230
        %v302 = vunpack.c.l.s4 1983009808
        %v303 = vunpack.c.0.s8 %v302
        %v304 = vlaneseq
        %v305 = vshrl.u32 %v304, 7
        %v306 = vsub.s32 %v303, %v305
        %v307 = vrot.slane %v230, %v306
        %v309 = vunpack.c.l.s4 1983009808
        %v310 = vunpack.c.0.s8 %v309
        %v311 = vlaneseq
        %v312 = vshrl.u32 %v311, 7
        %v313 = vsub.s32 %v310, %v312
        %v314 = vrot.slane %v300, %v313
        %v315 = vcombine.high %v307, %v307
        %v316 = vcombine.high %v314, %v314
        %vm317 = vcmask 31744
        %v319 = vsel %vm317, %v243, 0
        %v322 = vsel %vm317, %v244, 0
        %vm324 = vcmask 1041408
        %v326 = vsel %vm324, %v256, 0
        %v329 = vsel %vm324, %v264, 0
        %v332 = vsel %vm324, %v263, 0
        %v335 = vsel %vm324, %v265, 0
        %v338 = vsel %vm324, %v273, 0
        %v341 = vsel %vm324, %v281, 0
        %v344 = vsel %vm324, %v280, 0
        %v347 = vsel %vm324, %v282, 0
        %v350 = vsel %vm324, %v290, 0
        %v353 = vsel %vm324, %v298, 0
        %v356 = vsel %vm324, %v297, 0
        %v359 = vsel %vm324, %v299, 0
        %v362 = vsel %vm324, %v307, 0
        %v365 = vsel %vm324, %v315, 0
        %v368 = vsel %vm324, %v314, 0
        %v371 = vsel %vm324, %v316, 0
        %373 = vmatprep.subr.bf16.mxu0 %v329
        %374 = vmatpush1.bf16.msra.mxu0 %v326
        %375 = vmatprep.subr.bf16.mxu0 0
        %376 = vmatpush1.bf16.msra.mxu0 0
        %377 = vmatprep.subr.bf16.mxu0 0
        %378 = vmatpush1.bf16.msra.mxu0 0
        %379 = vmatprep.subr.bf16.mxu0 0
        %380 = vmatpush1.bf16.msra.mxu0 0
        %381 = vmatprep.subr.bf16.mxu0 0
        %382 = vmatpush1.bf16.msra.mxu0 0
        %383 = vmatprep.subr.bf16.mxu0 0
        %384 = vmatpush1.bf16.msra.mxu0 0
        %385 = vmatprep.subr.bf16.mxu0 0
        %386 = vmatpush1.bf16.msra.mxu0 0
        %387 = vmatprep.subr.bf16.mxu0 0
        %388 = vmatpush1.bf16.msra.mxu0 0
        %389 = vmatprep.subr.bf16.mxu0 0
        %390 = vmatpush1.bf16.msra.mxu0 0
        %391 = vmatprep.subr.bf16.mxu0 0
        %392 = vmatpush1.bf16.msra.mxu0 0
        %393 = vmatprep.subr.bf16.mxu0 0
        %394 = vmatpush1.bf16.msra.mxu0 0
        %395 = vmatprep.subr.bf16.mxu0 0
        %396 = vmatpush1.bf16.msra.mxu0 0
        %397 = vmatprep.subr.bf16.mxu0 0
        %398 = vmatpush1.bf16.msra.mxu0 0
        %399 = vmatprep.subr.bf16.mxu0 0
        %400 = vmatpush1.bf16.msra.mxu0 0
        %401 = vmatprep.subr.bf16.mxu0 0
        %402 = vmatpush1.bf16.msra.mxu0 0
        %403 = vmatprep.subr.bf16.mxu0 0
        %404 = vmatpush1.bf16.msra.mxu0 0
        %405 = vmatprep.mubr.bf16.mxu0 0
        %406 = vmatmul.mubr.bf16.gmra.mrb[0].mxu0 %v319
        %v407 = vpop.f32.mrb[0].mxu0
        %v408 = vadd.f32 0.0, %v407
        %v409 = vpop.f32.mrb[0].mxu0
        %v410 = vadd.f32 0.0, %v409
        %v411 = vpop.f32.mrb[0].mxu0
        %v412 = vadd.f32 0.0, %v411
        %v413 = vpop.f32.mrb[0].mxu0
        %v414 = vadd.f32 0.0, %v413
        %415 = vmatprep.mubr.bf16.mxu0 0
        %416 = vmatmul.mubr.bf16.gmra.mrb[0].mxu0 %v322
        %v417 = vpop.f32.mrb[0].mxu0
        %v418 = vadd.f32 0.0, %v417
        %v419 = vpop.f32.mrb[0].mxu0
        %v420 = vadd.f32 0.0, %v419
        %v421 = vpop.f32.mrb[0].mxu0
        %v422 = vadd.f32 0.0, %v421
        %v423 = vpop.f32.mrb[0].mxu0
        %v424 = vadd.f32 0.0, %v423
        %425 = vdwg.mxu0
        %426 = vmatprep.subr.bf16.mxu0 %v335
        %427 = vmatpush1.bf16.msra.mxu0 %v332
        %428 = vmatprep.subr.bf16.mxu0 0
        %429 = vmatpush1.bf16.msra.mxu0 0
        %430 = vmatprep.subr.bf16.mxu0 0
        %431 = vmatpush1.bf16.msra.mxu0 0
        %432 = vmatprep.subr.bf16.mxu0 0
        %433 = vmatpush1.bf16.msra.mxu0 0
        %434 = vmatprep.subr.bf16.mxu0 0
        %435 = vmatpush1.bf16.msra.mxu0 0
        %436 = vmatprep.subr.bf16.mxu0 0
        %437 = vmatpush1.bf16.msra.mxu0 0
        %438 = vmatprep.subr.bf16.mxu0 0
        %439 = vmatpush1.bf16.msra.mxu0 0
        %440 = vmatprep.subr.bf16.mxu0 0
        %441 = vmatpush1.bf16.msra.mxu0 0
        %442 = vmatprep.subr.bf16.mxu0 0
        %443 = vmatpush1.bf16.msra.mxu0 0
        %444 = vmatprep.subr.bf16.mxu0 0
        %445 = vmatpush1.bf16.msra.mxu0 0
        %446 = vmatprep.subr.bf16.mxu0 0
        %447 = vmatpush1.bf16.msra.mxu0 0
        %448 = vmatprep.subr.bf16.mxu0 0
        %449 = vmatpush1.bf16.msra.mxu0 0
        %450 = vmatprep.subr.bf16.mxu0 0
        %451 = vmatpush1.bf16.msra.mxu0 0
        %452 = vmatprep.subr.bf16.mxu0 0
        %453 = vmatpush1.bf16.msra.mxu0 0
        %454 = vmatprep.subr.bf16.mxu0 0
        %455 = vmatpush1.bf16.msra.mxu0 0
        %456 = vmatprep.subr.bf16.mxu0 0
        %457 = vmatpush1.bf16.msra.mxu0 0
        %458 = vmatprep.mubr.bf16.mxu0 0
        %459 = vmatmul.mubr.bf16.gmra.mrb[0].mxu0 %v319
        %v460 = vpop.f32.mrb[0].mxu0
        %v461 = vadd.f32 0.0, %v460
        %v462 = vpop.f32.mrb[0].mxu0
        %v463 = vadd.f32 0.0, %v462
        %v464 = vpop.f32.mrb[0].mxu0
        %v465 = vadd.f32 0.0, %v464
        %v466 = vpop.f32.mrb[0].mxu0
        %v467 = vadd.f32 0.0, %v466
        %468 = vmatprep.mubr.bf16.mxu0 0
        %469 = vmatmul.mubr.bf16.gmra.mrb[0].mxu0 %v322
        %v470 = vpop.f32.mrb[0].mxu0
        %v471 = vadd.f32 0.0, %v470
        %v472 = vpop.f32.mrb[0].mxu0
        %v473 = vadd.f32 0.0, %v472
        %v474 = vpop.f32.mrb[0].mxu0
        %v475 = vadd.f32 0.0, %v474
        %v476 = vpop.f32.mrb[0].mxu0
        %v477 = vadd.f32 0.0, %v476
        %478 = vdwg.mxu0
        %479 = vmatprep.subr.bf16.mxu0 %v341
        %480 = vmatpush1.bf16.msra.mxu0 %v338
        %481 = vmatprep.subr.bf16.mxu0 0
        %482 = vmatpush1.bf16.msra.mxu0 0
        %483 = vmatprep.subr.bf16.mxu0 0
        %484 = vmatpush1.bf16.msra.mxu0 0
        %485 = vmatprep.subr.bf16.mxu0 0
        %486 = vmatpush1.bf16.msra.mxu0 0
        %487 = vmatprep.subr.bf16.mxu0 0
        %488 = vmatpush1.bf16.msra.mxu0 0
        %489 = vmatprep.subr.bf16.mxu0 0
        %490 = vmatpush1.bf16.msra.mxu0 0
        %491 = vmatprep.subr.bf16.mxu0 0
        %492 = vmatpush1.bf16.msra.mxu0 0
        %493 = vmatprep.subr.bf16.mxu0 0
        %494 = vmatpush1.bf16.msra.mxu0 0
        %495 = vmatprep.subr.bf16.mxu0 0
        %496 = vmatpush1.bf16.msra.mxu0 0
        %497 = vmatprep.subr.bf16.mxu0 0
        %498 = vmatpush1.bf16.msra.mxu0 0
        %499 = vmatprep.subr.bf16.mxu0 0
        %500 = vmatpush1.bf16.msra.mxu0 0
        %501 = vmatprep.subr.bf16.mxu0 0
        %502 = vmatpush1.bf16.msra.mxu0 0
        %503 = vmatprep.subr.bf16.mxu0 0
        %504 = vmatpush1.bf16.msra.mxu0 0
        %505 = vmatprep.subr.bf16.mxu0 0
        %506 = vmatpush1.bf16.msra.mxu0 0
        %507 = vmatprep.subr.bf16.mxu0 0
        %508 = vmatpush1.bf16.msra.mxu0 0
        %509 = vmatprep.subr.bf16.mxu0 0
        %510 = vmatpush1.bf16.msra.mxu0 0
        %511 = vmatprep.mubr.bf16.mxu0 0
        %512 = vmatmul.mubr.bf16.gmra.mrb[0].mxu0 %v319
        %v513 = vpop.f32.mrb[0].mxu0
        %v514 = vadd.f32 0.0, %v513
        %v515 = vpop.f32.mrb[0].mxu0
        %v516 = vadd.f32 0.0, %v515
        %v517 = vpop.f32.mrb[0].mxu0
        %v518 = vadd.f32 0.0, %v517
        %v519 = vpop.f32.mrb[0].mxu0
        %v520 = vadd.f32 0.0, %v519
        %521 = vmatprep.mubr.bf16.mxu0 0
        %522 = vmatmul.mubr.bf16.gmra.mrb[0].mxu0 %v322
        %v523 = vpop.f32.mrb[0].mxu0
        %v524 = vadd.f32 0.0, %v523
        %v525 = vpop.f32.mrb[0].mxu0
        %v526 = vadd.f32 0.0, %v525
        %v527 = vpop.f32.mrb[0].mxu0
        %v528 = vadd.f32 0.0, %v527
        %v529 = vpop.f32.mrb[0].mxu0
        %v530 = vadd.f32 0.0, %v529
        %531 = vdwg.mxu0
        %532 = vmatprep.subr.bf16.mxu0 %v347
        %533 = vmatpush1.bf16.msra.mxu0 %v344
        %534 = vmatprep.subr.bf16.mxu0 0
        %535 = vmatpush1.bf16.msra.mxu0 0
        %536 = vmatprep.subr.bf16.mxu0 0
        %537 = vmatpush1.bf16.msra.mxu0 0
        %538 = vmatprep.subr.bf16.mxu0 0
        %539 = vmatpush1.bf16.msra.mxu0 0
        %540 = vmatprep.subr.bf16.mxu0 0
        %541 = vmatpush1.bf16.msra.mxu0 0
        %542 = vmatprep.subr.bf16.mxu0 0
        %543 = vmatpush1.bf16.msra.mxu0 0
        %544 = vmatprep.subr.bf16.mxu0 0
        %545 = vmatpush1.bf16.msra.mxu0 0
        %546 = vmatprep.subr.bf16.mxu0 0
        %547 = vmatpush1.bf16.msra.mxu0 0
        %548 = vmatprep.subr.bf16.mxu0 0
        %549 = vmatpush1.bf16.msra.mxu0 0
        %550 = vmatprep.subr.bf16.mxu0 0
        %551 = vmatpush1.bf16.msra.mxu0 0
        %552 = vmatprep.subr.bf16.mxu0 0
        %553 = vmatpush1.bf16.msra.mxu0 0
        %554 = vmatprep.subr.bf16.mxu0 0
        %555 = vmatpush1.bf16.msra.mxu0 0
        %556 = vmatprep.subr.bf16.mxu0 0
        %557 = vmatpush1.bf16.msra.mxu0 0
        %558 = vmatprep.subr.bf16.mxu0 0
        %559 = vmatpush1.bf16.msra.mxu0 0
        %560 = vmatprep.subr.bf16.mxu0 0
        %561 = vmatpush1.bf16.msra.mxu0 0
        %562 = vmatprep.subr.bf16.mxu0 0
        %563 = vmatpush1.bf16.msra.mxu0 0
        %564 = vmatprep.mubr.bf16.mxu0 0
        %565 = vmatmul.mubr.bf16.gmra.mrb[0].mxu0 %v319
        %v566 = vpop.f32.mrb[0].mxu0
        %v567 = vadd.f32 0.0, %v566
        %v568 = vpop.f32.mrb[0].mxu0
        %v569 = vadd.f32 0.0, %v568
        %v570 = vpop.f32.mrb[0].mxu0
        %v571 = vadd.f32 0.0, %v570
        %v572 = vpop.f32.mrb[0].mxu0
        %v573 = vadd.f32 0.0, %v572
        %574 = vmatprep.mubr.bf16.mxu0 0
        %575 = vmatmul.mubr.bf16.gmra.mrb[0].mxu0 %v322
        %v576 = vpop.f32.mrb[0].mxu0
        %v577 = vadd.f32 0.0, %v576
        %v578 = vpop.f32.mrb[0].mxu0
        %v579 = vadd.f32 0.0, %v578
        %v580 = vpop.f32.mrb[0].mxu0
        %v581 = vadd.f32 0.0, %v580
        %v582 = vpop.f32.mrb[0].mxu0
        %v583 = vadd.f32 0.0, %v582
        %584 = vdwg.mxu0
        %585 = vmatprep.subr.bf16.mxu0 %v353
        %586 = vmatpush1.bf16.msra.mxu0 %v350
        %587 = vmatprep.subr.bf16.mxu0 0
        %588 = vmatpush1.bf16.msra.mxu0 0
        %589 = vmatprep.subr.bf16.mxu0 0
        %590 = vmatpush1.bf16.msra.mxu0 0
        %591 = vmatprep.subr.bf16.mxu0 0
        %592 = vmatpush1.bf16.msra.mxu0 0
        %593 = vmatprep.subr.bf16.mxu0 0
        %594 = vmatpush1.bf16.msra.mxu0 0
        %595 = vmatprep.subr.bf16.mxu0 0
        %596 = vmatpush1.bf16.msra.mxu0 0
        %597 = vmatprep.subr.bf16.mxu0 0
        %598 = vmatpush1.bf16.msra.mxu0 0
        %599 = vmatprep.subr.bf16.mxu0 0
        %600 = vmatpush1.bf16.msra.mxu0 0
        %601 = vmatprep.subr.bf16.mxu0 0
        %602 = vmatpush1.bf16.msra.mxu0 0
        %603 = vmatprep.subr.bf16.mxu0 0
        %604 = vmatpush1.bf16.msra.mxu0 0
        %605 = vmatprep.subr.bf16.mxu0 0
        %606 = vmatpush1.bf16.msra.mxu0 0
        %607 = vmatprep.subr.bf16.mxu0 0
        %608 = vmatpush1.bf16.msra.mxu0 0
        %609 = vmatprep.subr.bf16.mxu0 0
        %610 = vmatpush1.bf16.msra.mxu0 0
        %611 = vmatprep.subr.bf16.mxu0 0
        %612 = vmatpush1.bf16.msra.mxu0 0
        %613 = vmatprep.subr.bf16.mxu0 0
        %614 = vmatpush1.bf16.msra.mxu0 0
        %615 = vmatprep.subr.bf16.mxu0 0
        %616 = vmatpush1.bf16.msra.mxu0 0
        %617 = vmatprep.mubr.bf16.mxu0 0
        %618 = vmatmul.mubr.bf16.gmra.mrb[0].mxu0 %v319
        %v619 = vpop.f32.mrb[0].mxu0
        %v620 = vadd.f32 0.0, %v619
        %v621 = vpop.f32.mrb[0].mxu0
        %v622 = vadd.f32 0.0, %v621
        %v623 = vpop.f32.mrb[0].mxu0
        %v624 = vadd.f32 0.0, %v623
        %v625 = vpop.f32.mrb[0].mxu0
        %v626 = vadd.f32 0.0, %v625
        %627 = vmatprep.mubr.bf16.mxu0 0
        %628 = vmatmul.mubr.bf16.gmra.mrb[0].mxu0 %v322
        %v629 = vpop.f32.mrb[0].mxu0
        %v630 = vadd.f32 0.0, %v629
        %v631 = vpop.f32.mrb[0].mxu0
        %v632 = vadd.f32 0.0, %v631
        %v633 = vpop.f32.mrb[0].mxu0
        %v634 = vadd.f32 0.0, %v633
        %v635 = vpop.f32.mrb[0].mxu0
        %v636 = vadd.f32 0.0, %v635
        %637 = vdwg.mxu0
        %638 = vmatprep.subr.bf16.mxu0 %v359
        %639 = vmatpush1.bf16.msra.mxu0 %v356
        %640 = vmatprep.subr.bf16.mxu0 0
        %641 = vmatpush1.bf16.msra.mxu0 0
        %642 = vmatprep.subr.bf16.mxu0 0
        %643 = vmatpush1.bf16.msra.mxu0 0
        %644 = vmatprep.subr.bf16.mxu0 0
        %645 = vmatpush1.bf16.msra.mxu0 0
        %646 = vmatprep.subr.bf16.mxu0 0
        %647 = vmatpush1.bf16.msra.mxu0 0
        %648 = vmatprep.subr.bf16.mxu0 0
        %649 = vmatpush1.bf16.msra.mxu0 0
        %650 = vmatprep.subr.bf16.mxu0 0
        %651 = vmatpush1.bf16.msra.mxu0 0
        %652 = vmatprep.subr.bf16.mxu0 0
        %653 = vmatpush1.bf16.msra.mxu0 0
        %654 = vmatprep.subr.bf16.mxu0 0
        %655 = vmatpush1.bf16.msra.mxu0 0
        %656 = vmatprep.subr.bf16.mxu0 0
        %657 = vmatpush1.bf16.msra.mxu0 0
        %658 = vmatprep.subr.bf16.mxu0 0
        %659 = vmatpush1.bf16.msra.mxu0 0
        %660 = vmatprep.subr.bf16.mxu0 0
        %661 = vmatpush1.bf16.msra.mxu0 0
        %662 = vmatprep.subr.bf16.mxu0 0
        %663 = vmatpush1.bf16.msra.mxu0 0
        %664 = vmatprep.subr.bf16.mxu0 0
        %665 = vmatpush1.bf16.msra.mxu0 0
        %666 = vmatprep.subr.bf16.mxu0 0
        %667 = vmatpush1.bf16.msra.mxu0 0
        %668 = vmatprep.subr.bf16.mxu0 0
        %669 = vmatpush1.bf16.msra.mxu0 0
        %670 = vmatprep.mubr.bf16.mxu0 0
        %671 = vmatmul.mubr.bf16.gmra.mrb[0].mxu0 %v319
        %v672 = vpop.f32.mrb[0].mxu0
        %v673 = vadd.f32 0.0, %v672
        %v674 = vpop.f32.mrb[0].mxu0
        %v675 = vadd.f32 0.0, %v674
        %v676 = vpop.f32.mrb[0].mxu0
        %v677 = vadd.f32 0.0, %v676
        %v678 = vpop.f32.mrb[0].mxu0
        %v679 = vadd.f32 0.0, %v678
        %680 = vmatprep.mubr.bf16.mxu0 0
        %681 = vmatmul.mubr.bf16.gmra.mrb[0].mxu0 %v322
        %v682 = vpop.f32.mrb[0].mxu0
        %v683 = vadd.f32 0.0, %v682
        %v684 = vpop.f32.mrb[0].mxu0
        %v685 = vadd.f32 0.0, %v684
        %v686 = vpop.f32.mrb[0].mxu0
        %v687 = vadd.f32 0.0, %v686
        %v688 = vpop.f32.mrb[0].mxu0
        %v689 = vadd.f32 0.0, %v688
        %690 = vdwg.mxu0
        %691 = vmatprep.subr.bf16.mxu0 %v365
        %692 = vmatpush1.bf16.msra.mxu0 %v362
        %693 = vmatprep.subr.bf16.mxu0 0
        %694 = vmatpush1.bf16.msra.mxu0 0
        %695 = vmatprep.subr.bf16.mxu0 0
        %696 = vmatpush1.bf16.msra.mxu0 0
        %697 = vmatprep.subr.bf16.mxu0 0
        %698 = vmatpush1.bf16.msra.mxu0 0
        %699 = vmatprep.subr.bf16.mxu0 0
        %700 = vmatpush1.bf16.msra.mxu0 0
        %701 = vmatprep.subr.bf16.mxu0 0
        %702 = vmatpush1.bf16.msra.mxu0 0
        %703 = vmatprep.subr.bf16.mxu0 0
        %704 = vmatpush1.bf16.msra.mxu0 0
        %705 = vmatprep.subr.bf16.mxu0 0
        %706 = vmatpush1.bf16.msra.mxu0 0
        %707 = vmatprep.subr.bf16.mxu0 0
        %708 = vmatpush1.bf16.msra.mxu0 0
        %709 = vmatprep.subr.bf16.mxu0 0
        %710 = vmatpush1.bf16.msra.mxu0 0
        %711 = vmatprep.subr.bf16.mxu0 0
        %712 = vmatpush1.bf16.msra.mxu0 0
        %713 = vmatprep.subr.bf16.mxu0 0
        %714 = vmatpush1.bf16.msra.mxu0 0
        %715 = vmatprep.subr.bf16.mxu0 0
        %716 = vmatpush1.bf16.msra.mxu0 0
        %717 = vmatprep.subr.bf16.mxu0 0
        %718 = vmatpush1.bf16.msra.mxu0 0
        %719 = vmatprep.subr.bf16.mxu0 0
        %720 = vmatpush1.bf16.msra.mxu0 0
        %721 = vmatprep.subr.bf16.mxu0 0
        %722 = vmatpush1.bf16.msra.mxu0 0
        %723 = vmatprep.mubr.bf16.mxu0 0
        %724 = vmatmul.mubr.bf16.gmra.mrb[0].mxu0 %v319
        %v725 = vpop.f32.mrb[0].mxu0
        %v726 = vadd.f32 0.0, %v725
        %v727 = vpop.f32.mrb[0].mxu0
        %v728 = vadd.f32 0.0, %v727
        %v729 = vpop.f32.mrb[0].mxu0
        %v730 = vadd.f32 0.0, %v729
        %v731 = vpop.f32.mrb[0].mxu0
        %v732 = vadd.f32 0.0, %v731
        %733 = vmatprep.mubr.bf16.mxu0 0
        %734 = vmatmul.mubr.bf16.gmra.mrb[0].mxu0 %v322
        %v735 = vpop.f32.mrb[0].mxu0
        %v736 = vadd.f32 0.0, %v735
        %v737 = vpop.f32.mrb[0].mxu0
        %v738 = vadd.f32 0.0, %v737
        %v739 = vpop.f32.mrb[0].mxu0
        %v740 = vadd.f32 0.0, %v739
        %v741 = vpop.f32.mrb[0].mxu0
        %v742 = vadd.f32 0.0, %v741
        %743 = vdwg.mxu0
        %744 = vmatprep.subr.bf16.mxu0 %v371
        %745 = vmatpush1.bf16.msra.mxu0 %v368
        %746 = vmatprep.subr.bf16.mxu0 0
        %747 = vmatpush1.bf16.msra.mxu0 0
        %748 = vmatprep.subr.bf16.mxu0 0
        %749 = vmatpush1.bf16.msra.mxu0 0
        %750 = vmatprep.subr.bf16.mxu0 0
        %751 = vmatpush1.bf16.msra.mxu0 0
        %752 = vmatprep.subr.bf16.mxu0 0
        %753 = vmatpush1.bf16.msra.mxu0 0
        %754 = vmatprep.subr.bf16.mxu0 0
        %755 = vmatpush1.bf16.msra.mxu0 0
        %756 = vmatprep.subr.bf16.mxu0 0
        %757 = vmatpush1.bf16.msra.mxu0 0
        %758 = vmatprep.subr.bf16.mxu0 0
        %759 = vmatpush1.bf16.msra.mxu0 0
        %760 = vmatprep.subr.bf16.mxu0 0
        %761 = vmatpush1.bf16.msra.mxu0 0
        %762 = vmatprep.subr.bf16.mxu0 0
        %763 = vmatpush1.bf16.msra.mxu0 0
        %764 = vmatprep.subr.bf16.mxu0 0
        %765 = vmatpush1.bf16.msra.mxu0 0
        %766 = vmatprep.subr.bf16.mxu0 0
        %767 = vmatpush1.bf16.msra.mxu0 0
        %768 = vmatprep.subr.bf16.mxu0 0
        %769 = vmatpush1.bf16.msra.mxu0 0
        %770 = vmatprep.subr.bf16.mxu0 0
        %771 = vmatpush1.bf16.msra.mxu0 0
        %772 = vmatprep.subr.bf16.mxu0 0
        %773 = vmatpush1.bf16.msra.mxu0 0
        %774 = vmatprep.subr.bf16.mxu0 0
        %775 = vmatpush1.bf16.msra.mxu0 0
        %776 = vmatprep.mubr.bf16.mxu0 0
        %777 = vmatmul.mubr.bf16.gmra.mrb[0].mxu0 %v319
        %v778 = vpop.f32.mrb[0].mxu0
        %v779 = vadd.f32 0.0, %v778
        %v780 = vpop.f32.mrb[0].mxu0
        %v781 = vadd.f32 0.0, %v780
        %v782 = vpop.f32.mrb[0].mxu0
        %v783 = vadd.f32 0.0, %v782
        %v784 = vpop.f32.mrb[0].mxu0
        %v785 = vadd.f32 0.0, %v784
        %786 = vmatprep.mubr.bf16.mxu0 0
        %787 = vmatmul.mubr.bf16.gmra.mrb[0].mxu0 %v322
        %v788 = vpop.f32.mrb[0].mxu0
        %v789 = vadd.f32 0.0, %v788
        %v790 = vpop.f32.mrb[0].mxu0
        %v791 = vadd.f32 0.0, %v790
        %v792 = vpop.f32.mrb[0].mxu0
        %v793 = vadd.f32 0.0, %v792
        %v794 = vpop.f32.mrb[0].mxu0
        %v795 = vadd.f32 0.0, %v794
        %796 = vdwg.mxu0
        %v797 = vpack.c.bf16 %v412, %v408
        %v798 = vpack.c.bf16 %v414, %v410
        %v799 = vpack.c.bf16 %v465, %v461
        %v800 = vpack.c.bf16 %v467, %v463
        %v801 = vpack.c.bf16 %v518, %v514
        %v802 = vpack.c.bf16 %v520, %v516
        %v803 = vpack.c.bf16 %v571, %v567
        %v804 = vpack.c.bf16 %v573, %v569
        %v805 = vpack.c.bf16 %v624, %v620
        %v806 = vpack.c.bf16 %v626, %v622
        %v807 = vpack.c.bf16 %v677, %v673
        %v808 = vpack.c.bf16 %v679, %v675
        %v809 = vpack.c.bf16 %v730, %v726
        %v810 = vpack.c.bf16 %v732, %v728
        %v811 = vpack.c.bf16 %v783, %v779
        %v812 = vpack.c.bf16 %v785, %v781
        %v813 = vpack.c.bf16 %v422, %v418
        %v814 = vpack.c.bf16 %v424, %v420
        %v815 = vpack.c.bf16 %v475, %v471
        %v816 = vpack.c.bf16 %v477, %v473
        %v817 = vpack.c.bf16 %v528, %v524
        %v818 = vpack.c.bf16 %v530, %v526
        %v819 = vpack.c.bf16 %v581, %v577
        %v820 = vpack.c.bf16 %v583, %v579
        %v821 = vpack.c.bf16 %v634, %v630
        %v822 = vpack.c.bf16 %v636, %v632
        %v823 = vpack.c.bf16 %v687, %v683
        %v824 = vpack.c.bf16 %v689, %v685
        %v825 = vpack.c.bf16 %v740, %v736
        %v826 = vpack.c.bf16 %v742, %v738
        %v827 = vpack.c.bf16 %v793, %v789
        %v828 = vpack.c.bf16 %v795, %v791
        %v829 = vmax.bf16 %v797, 0
        %v830 = vmax.bf16 %v798, 0
        %v831 = vmax.bf16 %v799, 0
        %v832 = vmax.bf16 %v800, 0
        %v833 = vmax.bf16 %v801, 0
        %v834 = vmax.bf16 %v802, 0
        %v835 = vmax.bf16 %v803, 0
        %v836 = vmax.bf16 %v804, 0
        %v837 = vmax.bf16 %v805, 0
        %v838 = vmax.bf16 %v806, 0
        %v839 = vmax.bf16 %v807, 0
        %v840 = vmax.bf16 %v808, 0
        %v841 = vmax.bf16 %v809, 0
        %v842 = vmax.bf16 %v810, 0
        %v843 = vmax.bf16 %v811, 0
        %v844 = vmax.bf16 %v812, 0
        %v845 = vmax.bf16 %v813, 0
        %v846 = vmax.bf16 %v814, 0
        %v847 = vmax.bf16 %v815, 0
        %v848 = vmax.bf16 %v816, 0
        %v849 = vmax.bf16 %v817, 0
        %v850 = vmax.bf16 %v818, 0
        %v851 = vmax.bf16 %v819, 0
        %v852 = vmax.bf16 %v820, 0
        %v853 = vmax.bf16 %v821, 0
        %v854 = vmax.bf16 %v822, 0
        %v855 = vmax.bf16 %v823, 0
        %v856 = vmax.bf16 %v824, 0
        %v857 = vmax.bf16 %v825, 0
        %v858 = vmax.bf16 %v826, 0
        %v859 = vmax.bf16 %v827, 0
        %v860 = vmax.bf16 %v828, 0
        %v861 = vld [vmem:[%s2] sm:$0xf]
        %v862 = vld [vmem:[%s2 + $0x4] sm:$0xf]
        %v863 = vld [vmem:[%s2 + $0x8] sm:$0xf]
        %v864 = vld [vmem:[%s2 + $0xc] sm:$0xf]
        %v865 = vld [vmem:[%s4] sm:$0xff]
        %v866 = vld [vmem:[%s4 + $0x8] sm:$0xff]
        %v867 = vld [vmem:[%s4 + $0x10] sm:$0xff]
        %v868 = vld [vmem:[%s4 + $0x18] sm:$0xff]
        %870 = vset.pattern.permute.xlu0 0
        %871 = vperm.xlu0 %870, %v865
        %v872 = vpop.permute.xlu0 %871
        %875 = vset.pattern.permute.xlu0 0
        %876 = vperm.xlu0 %875, %v866
        %v877 = vpop.permute.xlu0 %876
        %880 = vset.pattern.permute.xlu0 0
        %881 = vperm.xlu0 %880, %v867
        %v882 = vpop.permute.xlu0 %881
        %885 = vset.pattern.permute.xlu0 0
        %886 = vperm.xlu0 %885, %v868
        %v887 = vpop.permute.xlu0 %886
        %v893 = vunpack.c.l.b16 %v861
        %v894 = vunpack.c.l.b16 %v862
        %v895 = vunpack.c.l.b16 %v863
        %v896 = vunpack.c.l.b16 %v864
        %v897 = vpack.c.b16 %v894, %v893
        %v898 = vpack.c.b16 %v896, %v895
        %vm899 = vcmask 261120
        %v901 = vsel %vm899, %v897, 0
        %v904 = vsel %vm899, %v898, 0
        %906 = vmatprep.subr.bf16.mxu0 %v830
        %907 = vmatpush1.bf16.msra.mxu0 %v829
        %908 = vmatprep.subr.bf16.mxu0 %v846
        %909 = vmatpush1.bf16.msra.mxu0 %v845
        %910 = vmatprep.subr.bf16.mxu0 0
        %911 = vmatpush1.bf16.msra.mxu0 0
        %912 = vmatprep.subr.bf16.mxu0 0
        %913 = vmatpush1.bf16.msra.mxu0 0
        %914 = vmatprep.subr.bf16.mxu0 0
        %915 = vmatpush1.bf16.msra.mxu0 0
        %916 = vmatprep.subr.bf16.mxu0 0
        %917 = vmatpush1.bf16.msra.mxu0 0
        %918 = vmatprep.subr.bf16.mxu0 0
        %919 = vmatpush1.bf16.msra.mxu0 0
        %920 = vmatprep.subr.bf16.mxu0 0
        %921 = vmatpush1.bf16.msra.mxu0 0
        %922 = vmatprep.subr.bf16.mxu0 0
        %923 = vmatpush1.bf16.msra.mxu0 0
        %924 = vmatprep.subr.bf16.mxu0 0
        %925 = vmatpush1.bf16.msra.mxu0 0
        %926 = vmatprep.subr.bf16.mxu0 0
        %927 = vmatpush1.bf16.msra.mxu0 0
        %928 = vmatprep.subr.bf16.mxu0 0
        %929 = vmatpush1.bf16.msra.mxu0 0
        %930 = vmatprep.subr.bf16.mxu0 0
        %931 = vmatpush1.bf16.msra.mxu0 0
        %932 = vmatprep.subr.bf16.mxu0 0
        %933 = vmatpush1.bf16.msra.mxu0 0
        %934 = vmatprep.subr.bf16.mxu0 0
        %935 = vmatpush1.bf16.msra.mxu0 0
        %936 = vmatprep.subr.bf16.mxu0 0
        %937 = vmatpush1.bf16.msra.mxu0 0
        %938 = vmatprep.mubr.bf16.mxu0 0
        %939 = vmatmul.mubr.bf16.gmra.mrb[0].mxu0 %v901
        %v940 = vpop.f32.mrb[0].mxu0
        %v941 = vadd.f32 %v872, %v940
        %v942 = vpop.f32.mrb[0].mxu0
        %v943 = vadd.f32 %v872, %v942
        %v944 = vpop.f32.mrb[0].mxu0
        %v945 = vadd.f32 %v877, %v944
        %v946 = vpop.f32.mrb[0].mxu0
        %v947 = vadd.f32 %v877, %v946
        %948 = vmatprep.mubr.bf16.mxu0 0
        %949 = vmatmul.mubr.bf16.gmra.mrb[0].mxu0 %v904
        %v950 = vpop.f32.mrb[0].mxu0
        %v951 = vadd.f32 %v882, %v950
        %v952 = vpop.f32.mrb[0].mxu0
        %v953 = vadd.f32 %v882, %v952
        %v954 = vpop.f32.mrb[0].mxu0
        %v955 = vadd.f32 %v887, %v954
        %v956 = vpop.f32.mrb[0].mxu0
        %v957 = vadd.f32 %v887, %v956
        %958 = vdwg.mxu0
        %959 = vmatprep.subr.bf16.mxu0 %v832
        %960 = vmatpush1.bf16.msra.mxu0 %v831
        %961 = vmatprep.subr.bf16.mxu0 %v848
        %962 = vmatpush1.bf16.msra.mxu0 %v847
        %963 = vmatprep.subr.bf16.mxu0 0
        %964 = vmatpush1.bf16.msra.mxu0 0
        %965 = vmatprep.subr.bf16.mxu0 0
        %966 = vmatpush1.bf16.msra.mxu0 0
        %967 = vmatprep.subr.bf16.mxu0 0
        %968 = vmatpush1.bf16.msra.mxu0 0
        %969 = vmatprep.subr.bf16.mxu0 0
        %970 = vmatpush1.bf16.msra.mxu0 0
        %971 = vmatprep.subr.bf16.mxu0 0
        %972 = vmatpush1.bf16.msra.mxu0 0
        %973 = vmatprep.subr.bf16.mxu0 0
        %974 = vmatpush1.bf16.msra.mxu0 0
        %975 = vmatprep.subr.bf16.mxu0 0
        %976 = vmatpush1.bf16.msra.mxu0 0
        %977 = vmatprep.subr.bf16.mxu0 0
        %978 = vmatpush1.bf16.msra.mxu0 0
        %979 = vmatprep.subr.bf16.mxu0 0
        %980 = vmatpush1.bf16.msra.mxu0 0
        %981 = vmatprep.subr.bf16.mxu0 0
        %982 = vmatpush1.bf16.msra.mxu0 0
        %983 = vmatprep.subr.bf16.mxu0 0
        %984 = vmatpush1.bf16.msra.mxu0 0
        %985 = vmatprep.subr.bf16.mxu0 0
        %986 = vmatpush1.bf16.msra.mxu0 0
        %987 = vmatprep.subr.bf16.mxu0 0
        %988 = vmatpush1.bf16.msra.mxu0 0
        %989 = vmatprep.subr.bf16.mxu0 0
        %990 = vmatpush1.bf16.msra.mxu0 0
        %991 = vmatprep.mubr.bf16.mxu0 0
        %992 = vmatmul.mubr.bf16.gmra.mrb[0].mxu0 %v901
        %v993 = vpop.f32.mrb[0].mxu0
        %v994 = vadd.f32 %v872, %v993
        %v995 = vpop.f32.mrb[0].mxu0
        %v996 = vadd.f32 %v872, %v995
        %v997 = vpop.f32.mrb[0].mxu0
        %v998 = vadd.f32 %v877, %v997
        %v999 = vpop.f32.mrb[0].mxu0
        %v1000 = vadd.f32 %v877, %v999
        %1001 = vmatprep.mubr.bf16.mxu0 0
        %1002 = vmatmul.mubr.bf16.gmra.mrb[0].mxu0 %v904
        %v1003 = vpop.f32.mrb[0].mxu0
        %v1004 = vadd.f32 %v882, %v1003
        %v1005 = vpop.f32.mrb[0].mxu0
        %v1006 = vadd.f32 %v882, %v1005
        %v1007 = vpop.f32.mrb[0].mxu0
        %v1008 = vadd.f32 %v887, %v1007
        %v1009 = vpop.f32.mrb[0].mxu0
        %v1010 = vadd.f32 %v887, %v1009
        %1011 = vdwg.mxu0
        %1012 = vmatprep.subr.bf16.mxu0 %v834
        %1013 = vmatpush1.bf16.msra.mxu0 %v833
        %1014 = vmatprep.subr.bf16.mxu0 %v850
        %1015 = vmatpush1.bf16.msra.mxu0 %v849
        %1016 = vmatprep.subr.bf16.mxu0 0
        %1017 = vmatpush1.bf16.msra.mxu0 0
        %1018 = vmatprep.subr.bf16.mxu0 0
        %1019 = vmatpush1.bf16.msra.mxu0 0
        %1020 = vmatprep.subr.bf16.mxu0 0
        %1021 = vmatpush1.bf16.msra.mxu0 0
        %1022 = vmatprep.subr.bf16.mxu0 0
        %1023 = vmatpush1.bf16.msra.mxu0 0
        %1024 = vmatprep.subr.bf16.mxu0 0
        %1025 = vmatpush1.bf16.msra.mxu0 0
        %1026 = vmatprep.subr.bf16.mxu0 0
        %1027 = vmatpush1.bf16.msra.mxu0 0
        %1028 = vmatprep.subr.bf16.mxu0 0
        %1029 = vmatpush1.bf16.msra.mxu0 0
        %1030 = vmatprep.subr.bf16.mxu0 0
        %1031 = vmatpush1.bf16.msra.mxu0 0
        %1032 = vmatprep.subr.bf16.mxu0 0
        %1033 = vmatpush1.bf16.msra.mxu0 0
        %1034 = vmatprep.subr.bf16.mxu0 0
        %1035 = vmatpush1.bf16.msra.mxu0 0
        %1036 = vmatprep.subr.bf16.mxu0 0
        %1037 = vmatpush1.bf16.msra.mxu0 0
        %1038 = vmatprep.subr.bf16.mxu0 0
        %1039 = vmatpush1.bf16.msra.mxu0 0
        %1040 = vmatprep.subr.bf16.mxu0 0
        %1041 = vmatpush1.bf16.msra.mxu0 0
        %1042 = vmatprep.subr.bf16.mxu0 0
        %1043 = vmatpush1.bf16.msra.mxu0 0
        %1044 = vmatprep.mubr.bf16.mxu0 0
        %1045 = vmatmul.mubr.bf16.gmra.mrb[0].mxu0 %v901
        %v1046 = vpop.f32.mrb[0].mxu0
        %v1047 = vadd.f32 %v872, %v1046
        %v1048 = vpop.f32.mrb[0].mxu0
        %v1049 = vadd.f32 %v872, %v1048
        %v1050 = vpop.f32.mrb[0].mxu0
        %v1051 = vadd.f32 %v877, %v1050
        %v1052 = vpop.f32.mrb[0].mxu0
        %v1053 = vadd.f32 %v877, %v1052
        %1054 = vmatprep.mubr.bf16.mxu0 0
        %1055 = vmatmul.mubr.bf16.gmra.mrb[0].mxu0 %v904
        %v1056 = vpop.f32.mrb[0].mxu0
        %v1057 = vadd.f32 %v882, %v1056
        %v1058 = vpop.f32.mrb[0].mxu0
        %v1059 = vadd.f32 %v882, %v1058
        %v1060 = vpop.f32.mrb[0].mxu0
        %v1061 = vadd.f32 %v887, %v1060
        %v1062 = vpop.f32.mrb[0].mxu0
        %v1063 = vadd.f32 %v887, %v1062
        %1064 = vdwg.mxu0
        %1065 = vmatprep.subr.bf16.mxu0 %v836
        %1066 = vmatpush1.bf16.msra.mxu0 %v835
        %1067 = vmatprep.subr.bf16.mxu0 %v852
        %1068 = vmatpush1.bf16.msra.mxu0 %v851
        %1069 = vmatprep.subr.bf16.mxu0 0
        %1070 = vmatpush1.bf16.msra.mxu0 0
        %1071 = vmatprep.subr.bf16.mxu0 0
        %1072 = vmatpush1.bf16.msra.mxu0 0
        %1073 = vmatprep.subr.bf16.mxu0 0
        %1074 = vmatpush1.bf16.msra.mxu0 0
        %1075 = vmatprep.subr.bf16.mxu0 0
        %1076 = vmatpush1.bf16.msra.mxu0 0
        %1077 = vmatprep.subr.bf16.mxu0 0
        %1078 = vmatpush1.bf16.msra.mxu0 0
        %1079 = vmatprep.subr.bf16.mxu0 0
        %1080 = vmatpush1.bf16.msra.mxu0 0
        %1081 = vmatprep.subr.bf16.mxu0 0
        %1082 = vmatpush1.bf16.msra.mxu0 0
        %1083 = vmatprep.subr.bf16.mxu0 0
        %1084 = vmatpush1.bf16.msra.mxu0 0
        %1085 = vmatprep.subr.bf16.mxu0 0
        %1086 = vmatpush1.bf16.msra.mxu0 0
        %1087 = vmatprep.subr.bf16.mxu0 0
        %1088 = vmatpush1.bf16.msra.mxu0 0
        %1089 = vmatprep.subr.bf16.mxu0 0
        %1090 = vmatpush1.bf16.msra.mxu0 0
        %1091 = vmatprep.subr.bf16.mxu0 0
        %1092 = vmatpush1.bf16.msra.mxu0 0
        %1093 = vmatprep.subr.bf16.mxu0 0
        %1094 = vmatpush1.bf16.msra.mxu0 0
        %1095 = vmatprep.subr.bf16.mxu0 0
        %1096 = vmatpush1.bf16.msra.mxu0 0
        %1097 = vmatprep.mubr.bf16.mxu0 0
        %1098 = vmatmul.mubr.bf16.gmra.mrb[0].mxu0 %v901
        %v1099 = vpop.f32.mrb[0].mxu0
        %v1100 = vadd.f32 %v872, %v1099
        %v1101 = vpop.f32.mrb[0].mxu0
        %v1102 = vadd.f32 %v872, %v1101
        %v1103 = vpop.f32.mrb[0].mxu0
        %v1104 = vadd.f32 %v877, %v1103
        %v1105 = vpop.f32.mrb[0].mxu0
        %v1106 = vadd.f32 %v877, %v1105
        %1107 = vmatprep.mubr.bf16.mxu0 0
        %1108 = vmatmul.mubr.bf16.gmra.mrb[0].mxu0 %v904
        %v1109 = vpop.f32.mrb[0].mxu0
        %v1110 = vadd.f32 %v882, %v1109
        %v1111 = vpop.f32.mrb[0].mxu0
        %v1112 = vadd.f32 %v882, %v1111
        %v1113 = vpop.f32.mrb[0].mxu0
        %v1114 = vadd.f32 %v887, %v1113
        %v1115 = vpop.f32.mrb[0].mxu0
        %v1116 = vadd.f32 %v887, %v1115
        %1117 = vdwg.mxu0
        %1118 = vmatprep.subr.bf16.mxu0 %v838
        %1119 = vmatpush1.bf16.msra.mxu0 %v837
        %1120 = vmatprep.subr.bf16.mxu0 %v854
        %1121 = vmatpush1.bf16.msra.mxu0 %v853
        %1122 = vmatprep.subr.bf16.mxu0 0
        %1123 = vmatpush1.bf16.msra.mxu0 0
        %1124 = vmatprep.subr.bf16.mxu0 0
        %1125 = vmatpush1.bf16.msra.mxu0 0
        %1126 = vmatprep.subr.bf16.mxu0 0
        %1127 = vmatpush1.bf16.msra.mxu0 0
        %1128 = vmatprep.subr.bf16.mxu0 0
        %1129 = vmatpush1.bf16.msra.mxu0 0
        %1130 = vmatprep.subr.bf16.mxu0 0
        %1131 = vmatpush1.bf16.msra.mxu0 0
        %1132 = vmatprep.subr.bf16.mxu0 0
        %1133 = vmatpush1.bf16.msra.mxu0 0
        %1134 = vmatprep.subr.bf16.mxu0 0
        %1135 = vmatpush1.bf16.msra.mxu0 0
        %1136 = vmatprep.subr.bf16.mxu0 0
        %1137 = vmatpush1.bf16.msra.mxu0 0
        %1138 = vmatprep.subr.bf16.mxu0 0
        %1139 = vmatpush1.bf16.msra.mxu0 0
        %1140 = vmatprep.subr.bf16.mxu0 0
        %1141 = vmatpush1.bf16.msra.mxu0 0
        %1142 = vmatprep.subr.bf16.mxu0 0
        %1143 = vmatpush1.bf16.msra.mxu0 0
        %1144 = vmatprep.subr.bf16.mxu0 0
        %1145 = vmatpush1.bf16.msra.mxu0 0
        %1146 = vmatprep.subr.bf16.mxu0 0
        %1147 = vmatpush1.bf16.msra.mxu0 0
        %1148 = vmatprep.subr.bf16.mxu0 0
        %1149 = vmatpush1.bf16.msra.mxu0 0
        %1150 = vmatprep.mubr.bf16.mxu0 0
        %1151 = vmatmul.mubr.bf16.gmra.mrb[0].mxu0 %v901
        %v1152 = vpop.f32.mrb[0].mxu0
        %v1153 = vadd.f32 %v872, %v1152
        %v1154 = vpop.f32.mrb[0].mxu0
        %v1155 = vadd.f32 %v872, %v1154
        %v1156 = vpop.f32.mrb[0].mxu0
        %v1157 = vadd.f32 %v877, %v1156
        %v1158 = vpop.f32.mrb[0].mxu0
        %v1159 = vadd.f32 %v877, %v1158
        %1160 = vmatprep.mubr.bf16.mxu0 0
        %1161 = vmatmul.mubr.bf16.gmra.mrb[0].mxu0 %v904
        %v1162 = vpop.f32.mrb[0].mxu0
        %v1163 = vadd.f32 %v882, %v1162
        %v1164 = vpop.f32.mrb[0].mxu0
        %v1165 = vadd.f32 %v882, %v1164
        %v1166 = vpop.f32.mrb[0].mxu0
        %v1167 = vadd.f32 %v887, %v1166
        %v1168 = vpop.f32.mrb[0].mxu0
        %v1169 = vadd.f32 %v887, %v1168
        %1170 = vdwg.mxu0
        %1171 = vmatprep.subr.bf16.mxu0 %v840
        %1172 = vmatpush1.bf16.msra.mxu0 %v839
        %1173 = vmatprep.subr.bf16.mxu0 %v856
        %1174 = vmatpush1.bf16.msra.mxu0 %v855
        %1175 = vmatprep.subr.bf16.mxu0 0
        %1176 = vmatpush1.bf16.msra.mxu0 0
        %1177 = vmatprep.subr.bf16.mxu0 0
        %1178 = vmatpush1.bf16.msra.mxu0 0
        %1179 = vmatprep.subr.bf16.mxu0 0
        %1180 = vmatpush1.bf16.msra.mxu0 0
        %1181 = vmatprep.subr.bf16.mxu0 0
        %1182 = vmatpush1.bf16.msra.mxu0 0
        %1183 = vmatprep.subr.bf16.mxu0 0
        %1184 = vmatpush1.bf16.msra.mxu0 0
        %1185 = vmatprep.subr.bf16.mxu0 0
        %1186 = vmatpush1.bf16.msra.mxu0 0
        %1187 = vmatprep.subr.bf16.mxu0 0
        %1188 = vmatpush1.bf16.msra.mxu0 0
        %1189 = vmatprep.subr.bf16.mxu0 0
        %1190 = vmatpush1.bf16.msra.mxu0 0
        %1191 = vmatprep.subr.bf16.mxu0 0
        %1192 = vmatpush1.bf16.msra.mxu0 0
        %1193 = vmatprep.subr.bf16.mxu0 0
        %1194 = vmatpush1.bf16.msra.mxu0 0
        %1195 = vmatprep.subr.bf16.mxu0 0
        %1196 = vmatpush1.bf16.msra.mxu0 0
        %1197 = vmatprep.subr.bf16.mxu0 0
        %1198 = vmatpush1.bf16.msra.mxu0 0
        %1199 = vmatprep.subr.bf16.mxu0 0
        %1200 = vmatpush1.bf16.msra.mxu0 0
        %1201 = vmatprep.subr.bf16.mxu0 0
        %1202 = vmatpush1.bf16.msra.mxu0 0
        %1203 = vmatprep.mubr.bf16.mxu0 0
        %1204 = vmatmul.mubr.bf16.gmra.mrb[0].mxu0 %v901
        %v1205 = vpop.f32.mrb[0].mxu0
        %v1206 = vadd.f32 %v872, %v1205
        %v1207 = vpop.f32.mrb[0].mxu0
        %v1208 = vadd.f32 %v872, %v1207
        %v1209 = vpop.f32.mrb[0].mxu0
        %v1210 = vadd.f32 %v877, %v1209
        %v1211 = vpop.f32.mrb[0].mxu0
        %v1212 = vadd.f32 %v877, %v1211
        %1213 = vmatprep.mubr.bf16.mxu0 0
        %1214 = vmatmul.mubr.bf16.gmra.mrb[0].mxu0 %v904
        %v1215 = vpop.f32.mrb[0].mxu0
        %v1216 = vadd.f32 %v882, %v1215
        %v1217 = vpop.f32.mrb[0].mxu0
        %v1218 = vadd.f32 %v882, %v1217
        %v1219 = vpop.f32.mrb[0].mxu0
        %v1220 = vadd.f32 %v887, %v1219
        %v1221 = vpop.f32.mrb[0].mxu0
        %v1222 = vadd.f32 %v887, %v1221
        %1223 = vdwg.mxu0
        %1224 = vmatprep.subr.bf16.mxu0 %v842
        %1225 = vmatpush1.bf16.msra.mxu0 %v841
        %1226 = vmatprep.subr.bf16.mxu0 %v858
        %1227 = vmatpush1.bf16.msra.mxu0 %v857
        %1228 = vmatprep.subr.bf16.mxu0 0
        %1229 = vmatpush1.bf16.msra.mxu0 0
        %1230 = vmatprep.subr.bf16.mxu0 0
        %1231 = vmatpush1.bf16.msra.mxu0 0
        %1232 = vmatprep.subr.bf16.mxu0 0
        %1233 = vmatpush1.bf16.msra.mxu0 0
        %1234 = vmatprep.subr.bf16.mxu0 0
        %1235 = vmatpush1.bf16.msra.mxu0 0
        %1236 = vmatprep.subr.bf16.mxu0 0
        %1237 = vmatpush1.bf16.msra.mxu0 0
        %1238 = vmatprep.subr.bf16.mxu0 0
        %1239 = vmatpush1.bf16.msra.mxu0 0
        %1240 = vmatprep.subr.bf16.mxu0 0
        %1241 = vmatpush1.bf16.msra.mxu0 0
        %1242 = vmatprep.subr.bf16.mxu0 0
        %1243 = vmatpush1.bf16.msra.mxu0 0
        %1244 = vmatprep.subr.bf16.mxu0 0
        %1245 = vmatpush1.bf16.msra.mxu0 0
        %1246 = vmatprep.subr.bf16.mxu0 0
        %1247 = vmatpush1.bf16.msra.mxu0 0
        %1248 = vmatprep.subr.bf16.mxu0 0
        %1249 = vmatpush1.bf16.msra.mxu0 0
        %1250 = vmatprep.subr.bf16.mxu0 0
        %1251 = vmatpush1.bf16.msra.mxu0 0
        %1252 = vmatprep.subr.bf16.mxu0 0
        %1253 = vmatpush1.bf16.msra.mxu0 0
        %1254 = vmatprep.subr.bf16.mxu0 0
        %1255 = vmatpush1.bf16.msra.mxu0 0
        %1256 = vmatprep.mubr.bf16.mxu0 0
        %1257 = vmatmul.mubr.bf16.gmra.mrb[0].mxu0 %v901
        %v1258 = vpop.f32.mrb[0].mxu0
        %v1259 = vadd.f32 %v872, %v1258
        %v1260 = vpop.f32.mrb[0].mxu0
        %v1261 = vadd.f32 %v872, %v1260
        %v1262 = vpop.f32.mrb[0].mxu0
        %v1263 = vadd.f32 %v877, %v1262
        %v1264 = vpop.f32.mrb[0].mxu0
        %v1265 = vadd.f32 %v877, %v1264
        %1266 = vmatprep.mubr.bf16.mxu0 0
        %1267 = vmatmul.mubr.bf16.gmra.mrb[0].mxu0 %v904
        %v1268 = vpop.f32.mrb[0].mxu0
        %v1269 = vadd.f32 %v882, %v1268
        %v1270 = vpop.f32.mrb[0].mxu0
        %v1271 = vadd.f32 %v882, %v1270
        %v1272 = vpop.f32.mrb[0].mxu0
        %v1273 = vadd.f32 %v887, %v1272
        %v1274 = vpop.f32.mrb[0].mxu0
        %v1275 = vadd.f32 %v887, %v1274
        %1276 = vdwg.mxu0
        %1277 = vmatprep.subr.bf16.mxu0 %v844
        %1278 = vmatpush1.bf16.msra.mxu0 %v843
        %1279 = vmatprep.subr.bf16.mxu0 %v860
        %1280 = vmatpush1.bf16.msra.mxu0 %v859
        %1281 = vmatprep.subr.bf16.mxu0 0
        %1282 = vmatpush1.bf16.msra.mxu0 0
        %1283 = vmatprep.subr.bf16.mxu0 0
        %1284 = vmatpush1.bf16.msra.mxu0 0
        %1285 = vmatprep.subr.bf16.mxu0 0
        %1286 = vmatpush1.bf16.msra.mxu0 0
        %1287 = vmatprep.subr.bf16.mxu0 0
        %1288 = vmatpush1.bf16.msra.mxu0 0
        %1289 = vmatprep.subr.bf16.mxu0 0
        %1290 = vmatpush1.bf16.msra.mxu0 0
        %1291 = vmatprep.subr.bf16.mxu0 0
        %1292 = vmatpush1.bf16.msra.mxu0 0
        %1293 = vmatprep.subr.bf16.mxu0 0
        %1294 = vmatpush1.bf16.msra.mxu0 0
        %1295 = vmatprep.subr.bf16.mxu0 0
        %1296 = vmatpush1.bf16.msra.mxu0 0
        %1297 = vmatprep.subr.bf16.mxu0 0
        %1298 = vmatpush1.bf16.msra.mxu0 0
        %1299 = vmatprep.subr.bf16.mxu0 0
        %1300 = vmatpush1.bf16.msra.mxu0 0
        %1301 = vmatprep.subr.bf16.mxu0 0
        %1302 = vmatpush1.bf16.msra.mxu0 0
        %1303 = vmatprep.subr.bf16.mxu0 0
        %1304 = vmatpush1.bf16.msra.mxu0 0
        %1305 = vmatprep.subr.bf16.mxu0 0
        %1306 = vmatpush1.bf16.msra.mxu0 0
        %1307 = vmatprep.subr.bf16.mxu0 0
        %1308 = vmatpush1.bf16.msra.mxu0 0
        %1309 = vmatprep.mubr.bf16.mxu0 0
        %1310 = vmatmul.mubr.bf16.gmra.mrb[0].mxu0 %v901
        %v1311 = vpop.f32.mrb[0].mxu0
        %v1312 = vadd.f32 %v872, %v1311
        %v1313 = vpop.f32.mrb[0].mxu0
        %v1314 = vadd.f32 %v872, %v1313
        %v1315 = vpop.f32.mrb[0].mxu0
        %v1316 = vadd.f32 %v877, %v1315
        %v1317 = vpop.f32.mrb[0].mxu0
        %v1318 = vadd.f32 %v877, %v1317
        %1319 = vmatprep.mubr.bf16.mxu0 0
        %1320 = vmatmul.mubr.bf16.gmra.mrb[0].mxu0 %v904
        %v1321 = vpop.f32.mrb[0].mxu0
        %v1322 = vadd.f32 %v882, %v1321
        %v1323 = vpop.f32.mrb[0].mxu0
        %v1324 = vadd.f32 %v882, %v1323
        %v1325 = vpop.f32.mrb[0].mxu0
        %v1326 = vadd.f32 %v887, %v1325
        %v1327 = vpop.f32.mrb[0].mxu0
        %v1328 = vadd.f32 %v887, %v1327
        %1329 = vdwg.mxu0
        %v1330 = vpack.c.bf16 %v945, %v941
        %v1331 = vpack.c.bf16 %v947, %v943
        %v1332 = vpack.c.bf16 %v998, %v994
        %v1333 = vpack.c.bf16 %v1000, %v996
        %v1334 = vpack.c.bf16 %v1051, %v1047
        %v1335 = vpack.c.bf16 %v1053, %v1049
        %v1336 = vpack.c.bf16 %v1104, %v1100
        %v1337 = vpack.c.bf16 %v1106, %v1102
        %v1338 = vpack.c.bf16 %v1157, %v1153
        %v1339 = vpack.c.bf16 %v1159, %v1155
        %v1340 = vpack.c.bf16 %v1210, %v1206
        %v1341 = vpack.c.bf16 %v1212, %v1208
        %v1342 = vpack.c.bf16 %v1263, %v1259
        %v1343 = vpack.c.bf16 %v1265, %v1261
        %v1344 = vpack.c.bf16 %v1316, %v1312
        %v1345 = vpack.c.bf16 %v1318, %v1314
        %v1346 = vpack.c.bf16 %v955, %v951
        %v1347 = vpack.c.bf16 %v957, %v953
        %v1348 = vpack.c.bf16 %v1008, %v1004
        %v1349 = vpack.c.bf16 %v1010, %v1006
        %v1350 = vpack.c.bf16 %v1061, %v1057
        %v1351 = vpack.c.bf16 %v1063, %v1059
        %v1352 = vpack.c.bf16 %v1114, %v1110
        %v1353 = vpack.c.bf16 %v1116, %v1112
        %v1354 = vpack.c.bf16 %v1167, %v1163
        %v1355 = vpack.c.bf16 %v1169, %v1165
        %v1356 = vpack.c.bf16 %v1220, %v1216
        %v1357 = vpack.c.bf16 %v1222, %v1218
        %v1358 = vpack.c.bf16 %v1273, %v1269
        %v1359 = vpack.c.bf16 %v1275, %v1271
        %v1360 = vpack.c.bf16 %v1326, %v1322
        %v1361 = vpack.c.bf16 %v1328, %v1324
        %v1362 = vmax.bf16 %v1330, 0
        %v1363 = vmax.bf16 %v1331, 0
        %v1364 = vmax.bf16 %v1332, 0
        %v1365 = vmax.bf16 %v1333, 0
        %v1366 = vmax.bf16 %v1334, 0
        %v1367 = vmax.bf16 %v1335, 0
        %v1368 = vmax.bf16 %v1336, 0
        %v1369 = vmax.bf16 %v1337, 0
        %v1370 = vmax.bf16 %v1338, 0
        %v1371 = vmax.bf16 %v1339, 0
        %v1372 = vmax.bf16 %v1340, 0
        %v1373 = vmax.bf16 %v1341, 0
        %v1374 = vmax.bf16 %v1342, 0
        %v1375 = vmax.bf16 %v1343, 0
        %v1376 = vmax.bf16 %v1344, 0
        %v1377 = vmax.bf16 %v1345, 0
        %v1378 = vmax.bf16 %v1346, 0
        %v1379 = vmax.bf16 %v1347, 0
        %v1380 = vmax.bf16 %v1348, 0
        %v1381 = vmax.bf16 %v1349, 0
        %v1382 = vmax.bf16 %v1350, 0
        %v1383 = vmax.bf16 %v1351, 0
        %v1384 = vmax.bf16 %v1352, 0
        %v1385 = vmax.bf16 %v1353, 0
        %v1386 = vmax.bf16 %v1354, 0
        %v1387 = vmax.bf16 %v1355, 0
        %v1388 = vmax.bf16 %v1356, 0
        %v1389 = vmax.bf16 %v1357, 0
        %v1390 = vmax.bf16 %v1358, 0
        %v1391 = vmax.bf16 %v1359, 0
        %v1392 = vmax.bf16 %v1360, 0
        %v1393 = vmax.bf16 %v1361, 0
        %v1394 = vld [vmem:[%s3] sm:$0x1]
        %v1395 = vld [vmem:[%s4] sm:$0x1]
        %1397 = vset.pattern.permute.xlu0 1
        %1398 = vperm.xlu0 %1397, %v1395
        %v1399 = vpop.permute.xlu0 %1398
        %v1402 = vsel %vm899, %v1394, 0
        %1404 = vmatprep.subr.bf16.mxu0 %v1363
        %1405 = vmatpush1.bf16.msra.mxu0 %v1362
        %1406 = vmatprep.subr.bf16.mxu0 %v1379
        %1407 = vmatpush1.bf16.msra.mxu0 %v1378
        %1408 = vmatprep.subr.bf16.mxu0 0
        %1409 = vmatpush1.bf16.msra.mxu0 0
        %1410 = vmatprep.subr.bf16.mxu0 0
        %1411 = vmatpush1.bf16.msra.mxu0 0
        %1412 = vmatprep.subr.bf16.mxu0 0
        %1413 = vmatpush1.bf16.msra.mxu0 0
        %1414 = vmatprep.subr.bf16.mxu0 0
        %1415 = vmatpush1.bf16.msra.mxu0 0
        %1416 = vmatprep.subr.bf16.mxu0 0
        %1417 = vmatpush1.bf16.msra.mxu0 0
        %1418 = vmatprep.subr.bf16.mxu0 0
        %1419 = vmatpush1.bf16.msra.mxu0 0
        %1420 = vmatprep.subr.bf16.mxu0 0
        %1421 = vmatpush1.bf16.msra.mxu0 0
        %1422 = vmatprep.subr.bf16.mxu0 0
        %1423 = vmatpush1.bf16.msra.mxu0 0
        %1424 = vmatprep.subr.bf16.mxu0 0
        %1425 = vmatpush1.bf16.msra.mxu0 0
        %1426 = vmatprep.subr.bf16.mxu0 0
        %1427 = vmatpush1.bf16.msra.mxu0 0
        %1428 = vmatprep.subr.bf16.mxu0 0
        %1429 = vmatpush1.bf16.msra.mxu0 0
        %1430 = vmatprep.subr.bf16.mxu0 0
        %1431 = vmatpush1.bf16.msra.mxu0 0
        %1432 = vmatprep.subr.bf16.mxu0 0
        %1433 = vmatpush1.bf16.msra.mxu0 0
        %1434 = vmatprep.subr.bf16.mxu0 0
        %1435 = vmatpush1.bf16.msra.mxu0 0
        %1436 = vmatprep.mubr.bf16.mxu0 0
        %1437 = vmatmul.mubr.bf16.gmra.mrb[0].mxu0 %v1402
        %v1438 = vpop.f32.mrb[0].mxu0
        %v1439 = vadd.f32 %v1399, %v1438
        %v1440 = vpop.f32.mrb[0].mxu0
        %v1441 = vadd.f32 %v1399, %v1440
        %v1442 = vpop.f32.mrb[0].mxu0
        %v1443 = vpop.f32.mrb[0].mxu0
        %1444 = vdwg.mxu0
        %1445 = vmatprep.subr.bf16.mxu0 %v1365
        %1446 = vmatpush1.bf16.msra.mxu0 %v1364
        %1447 = vmatprep.subr.bf16.mxu0 %v1381
        %1448 = vmatpush1.bf16.msra.mxu0 %v1380
        %1449 = vmatprep.subr.bf16.mxu0 0
        %1450 = vmatpush1.bf16.msra.mxu0 0
        %1451 = vmatprep.subr.bf16.mxu0 0
        %1452 = vmatpush1.bf16.msra.mxu0 0
        %1453 = vmatprep.subr.bf16.mxu0 0
        %1454 = vmatpush1.bf16.msra.mxu0 0
        %1455 = vmatprep.subr.bf16.mxu0 0
        %1456 = vmatpush1.bf16.msra.mxu0 0
        %1457 = vmatprep.subr.bf16.mxu0 0
        %1458 = vmatpush1.bf16.msra.mxu0 0
        %1459 = vmatprep.subr.bf16.mxu0 0
        %1460 = vmatpush1.bf16.msra.mxu0 0
        %1461 = vmatprep.subr.bf16.mxu0 0
        %1462 = vmatpush1.bf16.msra.mxu0 0
        %1463 = vmatprep.subr.bf16.mxu0 0
        %1464 = vmatpush1.bf16.msra.mxu0 0
        %1465 = vmatprep.subr.bf16.mxu0 0
        %1466 = vmatpush1.bf16.msra.mxu0 0
        %1467 = vmatprep.subr.bf16.mxu0 0
        %1468 = vmatpush1.bf16.msra.mxu0 0
        %1469 = vmatprep.subr.bf16.mxu0 0
        %1470 = vmatpush1.bf16.msra.mxu0 0
        %1471 = vmatprep.subr.bf16.mxu0 0
        %1472 = vmatpush1.bf16.msra.mxu0 0
        %1473 = vmatprep.subr.bf16.mxu0 0
        %1474 = vmatpush1.bf16.msra.mxu0 0
        %1475 = vmatprep.subr.bf16.mxu0 0
        %1476 = vmatpush1.bf16.msra.mxu0 0
        %1477 = vmatprep.mubr.bf16.mxu0 0
        %1478 = vmatmul.mubr.bf16.gmra.mrb[0].mxu0 %v1402
        %v1479 = vpop.f32.mrb[0].mxu0
        %v1480 = vadd.f32 %v1399, %v1479
        %v1481 = vpop.f32.mrb[0].mxu0
        %v1482 = vadd.f32 %v1399, %v1481
        %v1483 = vpop.f32.mrb[0].mxu0
        %v1484 = vpop.f32.mrb[0].mxu0
        %1485 = vdwg.mxu0
        %1486 = vmatprep.subr.bf16.mxu0 %v1367
        %1487 = vmatpush1.bf16.msra.mxu0 %v1366
        %1488 = vmatprep.subr.bf16.mxu0 %v1383
        %1489 = vmatpush1.bf16.msra.mxu0 %v1382
        %1490 = vmatprep.subr.bf16.mxu0 0
        %1491 = vmatpush1.bf16.msra.mxu0 0
        %1492 = vmatprep.subr.bf16.mxu0 0
        %1493 = vmatpush1.bf16.msra.mxu0 0
        %1494 = vmatprep.subr.bf16.mxu0 0
        %1495 = vmatpush1.bf16.msra.mxu0 0
        %1496 = vmatprep.subr.bf16.mxu0 0
        %1497 = vmatpush1.bf16.msra.mxu0 0
        %1498 = vmatprep.subr.bf16.mxu0 0
        %1499 = vmatpush1.bf16.msra.mxu0 0
        %1500 = vmatprep.subr.bf16.mxu0 0
        %1501 = vmatpush1.bf16.msra.mxu0 0
        %1502 = vmatprep.subr.bf16.mxu0 0
        %1503 = vmatpush1.bf16.msra.mxu0 0
        %1504 = vmatprep.subr.bf16.mxu0 0
        %1505 = vmatpush1.bf16.msra.mxu0 0
        %1506 = vmatprep.subr.bf16.mxu0 0
        %1507 = vmatpush1.bf16.msra.mxu0 0
        %1508 = vmatprep.subr.bf16.mxu0 0
        %1509 = vmatpush1.bf16.msra.mxu0 0
        %1510 = vmatprep.subr.bf16.mxu0 0
        %1511 = vmatpush1.bf16.msra.mxu0 0
        %1512 = vmatprep.subr.bf16.mxu0 0
        %1513 = vmatpush1.bf16.msra.mxu0 0
        %1514 = vmatprep.subr.bf16.mxu0 0
        %1515 = vmatpush1.bf16.msra.mxu0 0
        %1516 = vmatprep.subr.bf16.mxu0 0
        %1517 = vmatpush1.bf16.msra.mxu0 0
        %1518 = vmatprep.mubr.bf16.mxu0 0
        %1519 = vmatmul.mubr.bf16.gmra.mrb[0].mxu0 %v1402
        %v1520 = vpop.f32.mrb[0].mxu0
        %v1521 = vadd.f32 %v1399, %v1520
        %v1522 = vpop.f32.mrb[0].mxu0
        %v1523 = vadd.f32 %v1399, %v1522
        %v1524 = vpop.f32.mrb[0].mxu0
        %v1525 = vpop.f32.mrb[0].mxu0
        %1526 = vdwg.mxu0
        %1527 = vmatprep.subr.bf16.mxu0 %v1369
        %1528 = vmatpush1.bf16.msra.mxu0 %v1368
        %1529 = vmatprep.subr.bf16.mxu0 %v1385
        %1530 = vmatpush1.bf16.msra.mxu0 %v1384
        %1531 = vmatprep.subr.bf16.mxu0 0
        %1532 = vmatpush1.bf16.msra.mxu0 0
        %1533 = vmatprep.subr.bf16.mxu0 0
        %1534 = vmatpush1.bf16.msra.mxu0 0
        %1535 = vmatprep.subr.bf16.mxu0 0
        %1536 = vmatpush1.bf16.msra.mxu0 0
        %1537 = vmatprep.subr.bf16.mxu0 0
        %1538 = vmatpush1.bf16.msra.mxu0 0
        %1539 = vmatprep.subr.bf16.mxu0 0
        %1540 = vmatpush1.bf16.msra.mxu0 0
        %1541 = vmatprep.subr.bf16.mxu0 0
        %1542 = vmatpush1.bf16.msra.mxu0 0
        %1543 = vmatprep.subr.bf16.mxu0 0
        %1544 = vmatpush1.bf16.msra.mxu0 0
        %1545 = vmatprep.subr.bf16.mxu0 0
        %1546 = vmatpush1.bf16.msra.mxu0 0
        %1547 = vmatprep.subr.bf16.mxu0 0
        %1548 = vmatpush1.bf16.msra.mxu0 0
        %1549 = vmatprep.subr.bf16.mxu0 0
        %1550 = vmatpush1.bf16.msra.mxu0 0
        %1551 = vmatprep.subr.bf16.mxu0 0
        %1552 = vmatpush1.bf16.msra.mxu0 0
        %1553 = vmatprep.subr.bf16.mxu0 0
        %1554 = vmatpush1.bf16.msra.mxu0 0
        %1555 = vmatprep.subr.bf16.mxu0 0
        %1556 = vmatpush1.bf16.msra.mxu0 0
        %1557 = vmatprep.subr.bf16.mxu0 0
        %1558 = vmatpush1.bf16.msra.mxu0 0
        %1559 = vmatprep.mubr.bf16.mxu0 0
        %1560 = vmatmul.mubr.bf16.gmra.mrb[0].mxu0 %v1402
        %v1561 = vpop.f32.mrb[0].mxu0
        %v1562 = vadd.f32 %v1399, %v1561
        %v1563 = vpop.f32.mrb[0].mxu0
        %v1564 = vadd.f32 %v1399, %v1563
        %v1565 = vpop.f32.mrb[0].mxu0
        %v1566 = vpop.f32.mrb[0].mxu0
        %1567 = vdwg.mxu0
        %1568 = vmatprep.subr.bf16.mxu0 %v1371
        %1569 = vmatpush1.bf16.msra.mxu0 %v1370
        %1570 = vmatprep.subr.bf16.mxu0 %v1387
        %1571 = vmatpush1.bf16.msra.mxu0 %v1386
        %1572 = vmatprep.subr.bf16.mxu0 0
        %1573 = vmatpush1.bf16.msra.mxu0 0
        %1574 = vmatprep.subr.bf16.mxu0 0
        %1575 = vmatpush1.bf16.msra.mxu0 0
        %1576 = vmatprep.subr.bf16.mxu0 0
        %1577 = vmatpush1.bf16.msra.mxu0 0
        %1578 = vmatprep.subr.bf16.mxu0 0
        %1579 = vmatpush1.bf16.msra.mxu0 0
        %1580 = vmatprep.subr.bf16.mxu0 0
        %1581 = vmatpush1.bf16.msra.mxu0 0
        %1582 = vmatprep.subr.bf16.mxu0 0
        %1583 = vmatpush1.bf16.msra.mxu0 0
        %1584 = vmatprep.subr.bf16.mxu0 0
        %1585 = vmatpush1.bf16.msra.mxu0 0
        %1586 = vmatprep.subr.bf16.mxu0 0
        %1587 = vmatpush1.bf16.msra.mxu0 0
        %1588 = vmatprep.subr.bf16.mxu0 0
        %1589 = vmatpush1.bf16.msra.mxu0 0
        %1590 = vmatprep.subr.bf16.mxu0 0
        %1591 = vmatpush1.bf16.msra.mxu0 0
        %1592 = vmatprep.subr.bf16.mxu0 0
        %1593 = vmatpush1.bf16.msra.mxu0 0
        %1594 = vmatprep.subr.bf16.mxu0 0
        %1595 = vmatpush1.bf16.msra.mxu0 0
        %1596 = vmatprep.subr.bf16.mxu0 0
        %1597 = vmatpush1.bf16.msra.mxu0 0
        %1598 = vmatprep.subr.bf16.mxu0 0
        %1599 = vmatpush1.bf16.msra.mxu0 0
        %1600 = vmatprep.mubr.bf16.mxu0 0
        %1601 = vmatmul.mubr.bf16.gmra.mrb[0].mxu0 %v1402
        %v1602 = vpop.f32.mrb[0].mxu0
        %v1603 = vadd.f32 %v1399, %v1602
        %v1604 = vpop.f32.mrb[0].mxu0
        %v1605 = vadd.f32 %v1399, %v1604
        %v1606 = vpop.f32.mrb[0].mxu0
        %v1607 = vpop.f32.mrb[0].mxu0
        %1608 = vdwg.mxu0
        %1609 = vmatprep.subr.bf16.mxu0 %v1373
        %1610 = vmatpush1.bf16.msra.mxu0 %v1372
        %1611 = vmatprep.subr.bf16.mxu0 %v1389
        %1612 = vmatpush1.bf16.msra.mxu0 %v1388
        %1613 = vmatprep.subr.bf16.mxu0 0
        %1614 = vmatpush1.bf16.msra.mxu0 0
        %1615 = vmatprep.subr.bf16.mxu0 0
        %1616 = vmatpush1.bf16.msra.mxu0 0
        %1617 = vmatprep.subr.bf16.mxu0 0
        %1618 = vmatpush1.bf16.msra.mxu0 0
        %1619 = vmatprep.subr.bf16.mxu0 0
        %1620 = vmatpush1.bf16.msra.mxu0 0
        %1621 = vmatprep.subr.bf16.mxu0 0
        %1622 = vmatpush1.bf16.msra.mxu0 0
        %1623 = vmatprep.subr.bf16.mxu0 0
        %1624 = vmatpush1.bf16.msra.mxu0 0
        %1625 = vmatprep.subr.bf16.mxu0 0
        %1626 = vmatpush1.bf16.msra.mxu0 0
        %1627 = vmatprep.subr.bf16.mxu0 0
        %1628 = vmatpush1.bf16.msra.mxu0 0
        %1629 = vmatprep.subr.bf16.mxu0 0
        %1630 = vmatpush1.bf16.msra.mxu0 0
        %1631 = vmatprep.subr.bf16.mxu0 0
        %1632 = vmatpush1.bf16.msra.mxu0 0
        %1633 = vmatprep.subr.bf16.mxu0 0
        %1634 = vmatpush1.bf16.msra.mxu0 0
        %1635 = vmatprep.subr.bf16.mxu0 0
        %1636 = vmatpush1.bf16.msra.mxu0 0
        %1637 = vmatprep.subr.bf16.mxu0 0
        %1638 = vmatpush1.bf16.msra.mxu0 0
        %1639 = vmatprep.subr.bf16.mxu0 0
        %1640 = vmatpush1.bf16.msra.mxu0 0
        %1641 = vmatprep.mubr.bf16.mxu0 0
        %1642 = vmatmul.mubr.bf16.gmra.mrb[0].mxu0 %v1402
        %v1643 = vpop.f32.mrb[0].mxu0
        %v1644 = vadd.f32 %v1399, %v1643
        %v1645 = vpop.f32.mrb[0].mxu0
        %v1646 = vadd.f32 %v1399, %v1645
        %v1647 = vpop.f32.mrb[0].mxu0
        %v1648 = vpop.f32.mrb[0].mxu0
        %1649 = vdwg.mxu0
        %1650 = vmatprep.subr.bf16.mxu0 %v1375
        %1651 = vmatpush1.bf16.msra.mxu0 %v1374
        %1652 = vmatprep.subr.bf16.mxu0 %v1391
        %1653 = vmatpush1.bf16.msra.mxu0 %v1390
        %1654 = vmatprep.subr.bf16.mxu0 0
        %1655 = vmatpush1.bf16.msra.mxu0 0
        %1656 = vmatprep.subr.bf16.mxu0 0
        %1657 = vmatpush1.bf16.msra.mxu0 0
        %1658 = vmatprep.subr.bf16.mxu0 0
        %1659 = vmatpush1.bf16.msra.mxu0 0
        %1660 = vmatprep.subr.bf16.mxu0 0
        %1661 = vmatpush1.bf16.msra.mxu0 0
        %1662 = vmatprep.subr.bf16.mxu0 0
        %1663 = vmatpush1.bf16.msra.mxu0 0
        %1664 = vmatprep.subr.bf16.mxu0 0
        %1665 = vmatpush1.bf16.msra.mxu0 0
        %1666 = vmatprep.subr.bf16.mxu0 0
        %1667 = vmatpush1.bf16.msra.mxu0 0
        %1668 = vmatprep.subr.bf16.mxu0 0
        %1669 = vmatpush1.bf16.msra.mxu0 0
        %1670 = vmatprep.subr.bf16.mxu0 0
        %1671 = vmatpush1.bf16.msra.mxu0 0
        %1672 = vmatprep.subr.bf16.mxu0 0
        %1673 = vmatpush1.bf16.msra.mxu0 0
        %1674 = vmatprep.subr.bf16.mxu0 0
        %1675 = vmatpush1.bf16.msra.mxu0 0
        %1676 = vmatprep.subr.bf16.mxu0 0
        %1677 = vmatpush1.bf16.msra.mxu0 0
        %1678 = vmatprep.subr.bf16.mxu0 0
        %1679 = vmatpush1.bf16.msra.mxu0 0
        %1680 = vmatprep.subr.bf16.mxu0 0
        %1681 = vmatpush1.bf16.msra.mxu0 0
        %1682 = vmatprep.mubr.bf16.mxu0 0
        %1683 = vmatmul.mubr.bf16.gmra.mrb[0].mxu0 %v1402
        %v1684 = vpop.f32.mrb[0].mxu0
        %v1685 = vadd.f32 %v1399, %v1684
        %v1686 = vpop.f32.mrb[0].mxu0
        %v1687 = vadd.f32 %v1399, %v1686
        %v1688 = vpop.f32.mrb[0].mxu0
        %v1689 = vpop.f32.mrb[0].mxu0
        %1690 = vdwg.mxu0
        %1691 = vmatprep.subr.bf16.mxu0 %v1377
        %1692 = vmatpush1.bf16.msra.mxu0 %v1376
        %1693 = vmatprep.subr.bf16.mxu0 %v1393
        %1694 = vmatpush1.bf16.msra.mxu0 %v1392
        %1695 = vmatprep.subr.bf16.mxu0 0
        %1696 = vmatpush1.bf16.msra.mxu0 0
        %1697 = vmatprep.subr.bf16.mxu0 0
        %1698 = vmatpush1.bf16.msra.mxu0 0
        %1699 = vmatprep.subr.bf16.mxu0 0
        %1700 = vmatpush1.bf16.msra.mxu0 0
        %1701 = vmatprep.subr.bf16.mxu0 0
        %1702 = vmatpush1.bf16.msra.mxu0 0
        %1703 = vmatprep.subr.bf16.mxu0 0
        %1704 = vmatpush1.bf16.msra.mxu0 0
        %1705 = vmatprep.subr.bf16.mxu0 0
        %1706 = vmatpush1.bf16.msra.mxu0 0
        %1707 = vmatprep.subr.bf16.mxu0 0
        %1708 = vmatpush1.bf16.msra.mxu0 0
        %1709 = vmatprep.subr.bf16.mxu0 0
        %1710 = vmatpush1.bf16.msra.mxu0 0
        %1711 = vmatprep.subr.bf16.mxu0 0
        %1712 = vmatpush1.bf16.msra.mxu0 0
        %1713 = vmatprep.subr.bf16.mxu0 0
        %1714 = vmatpush1.bf16.msra.mxu0 0
        %1715 = vmatprep.subr.bf16.mxu0 0
        %1716 = vmatpush1.bf16.msra.mxu0 0
        %1717 = vmatprep.subr.bf16.mxu0 0
        %1718 = vmatpush1.bf16.msra.mxu0 0
        %1719 = vmatprep.subr.bf16.mxu0 0
        %1720 = vmatpush1.bf16.msra.mxu0 0
        %1721 = vmatprep.subr.bf16.mxu0 0
        %1722 = vmatpush1.bf16.msra.mxu0 0
        %1723 = vmatprep.mubr.bf16.mxu0 0
        %1724 = vmatmul.mubr.bf16.gmra.mrb[0].mxu0 %v1402
        %v1725 = vpop.f32.mrb[0].mxu0
        %v1726 = vadd.f32 %v1399, %v1725
        %v1727 = vpop.f32.mrb[0].mxu0
        %v1728 = vadd.f32 %v1399, %v1727
        %v1729 = vpop.f32.mrb[0].mxu0
        %v1730 = vpop.f32.mrb[0].mxu0
        %1731 = vdwg.mxu0
        %v1748 = vcombine.low %v1439, %v1441
        %v1749 = vcombine.low %v1480, %v1482
        %v1750 = vcombine.low %v1521, %v1523
        %v1751 = vcombine.low %v1562, %v1564
        %v1753 = vunpack.c.l.s4 1966171168
        %v1754 = vunpack.c.0.s8 %v1753
        %v1755 = vlaneseq
        %v1756 = vshrl.u32 %v1755, 7
        %v1757 = vsub.s32 %v1754, %v1756
        %v1758 = vrot.slane %v1748, %v1757
        %v1760 = vunpack.c.l.s4 1966171168
        %v1761 = vunpack.c.0.s8 %v1760
        %v1762 = vlaneseq
        %v1763 = vshrl.u32 %v1762, 7
        %v1764 = vsub.s32 %v1761, %v1763
        %v1765 = vrot.slane %v1749, %v1764
        %v1767 = vunpack.c.l.s4 1966171168
        %v1768 = vunpack.c.0.s8 %v1767
        %v1769 = vlaneseq
        %v1770 = vshrl.u32 %v1769, 7
        %v1771 = vsub.s32 %v1768, %v1770
        %v1772 = vrot.slane %v1750, %v1771
        %v1774 = vunpack.c.l.s4 1966171168
        %v1775 = vunpack.c.0.s8 %v1774
        %v1776 = vlaneseq
        %v1777 = vshrl.u32 %v1776, 7
        %v1778 = vsub.s32 %v1775, %v1777
        %v1779 = vrot.slane %v1751, %v1778
        %v1780 = vcombine.low %v1758, %v1765
        %v1781 = vcombine.low %v1772, %v1779
        %v1783 = vunpack.c.l.s4 1966171168
        %v1784 = vunpack.c.0.s8 %v1783
        %v1785 = vlaneseq
        %v1786 = vshrl.u32 %v1785, 7
        %v1787 = vsub.s32 %v1784, %v1786
        %v1788 = vrot.slane %v1780, %v1787
        %v1790 = vunpack.c.l.s4 1966171168
        %v1791 = vunpack.c.0.s8 %v1790
        %v1792 = vlaneseq
        %v1793 = vshrl.u32 %v1792, 7
        %v1794 = vsub.s32 %v1791, %v1793
        %v1795 = vrot.slane %v1781, %v1794
        %v1796 = vcombine.low %v1788, %v1795
        %v1797 = vcombine.low %v1603, %v1605
        %v1798 = vcombine.low %v1644, %v1646
        %v1799 = vcombine.low %v1685, %v1687
        %v1800 = vcombine.low %v1726, %v1728
        %v1802 = vunpack.c.l.s4 1966171168
        %v1803 = vunpack.c.0.s8 %v1802
        %v1804 = vlaneseq
        %v1805 = vshrl.u32 %v1804, 7
        %v1806 = vsub.s32 %v1803, %v1805
        %v1807 = vrot.slane %v1797, %v1806
        %v1809 = vunpack.c.l.s4 1966171168
        %v1810 = vunpack.c.0.s8 %v1809
        %v1811 = vlaneseq
        %v1812 = vshrl.u32 %v1811, 7
        %v1813 = vsub.s32 %v1810, %v1812
        %v1814 = vrot.slane %v1798, %v1813
        %v1816 = vunpack.c.l.s4 1966171168
        %v1817 = vunpack.c.0.s8 %v1816
        %v1818 = vlaneseq
        %v1819 = vshrl.u32 %v1818, 7
        %v1820 = vsub.s32 %v1817, %v1819
        %v1821 = vrot.slane %v1799, %v1820
        %v1823 = vunpack.c.l.s4 1966171168
        %v1824 = vunpack.c.0.s8 %v1823
        %v1825 = vlaneseq
        %v1826 = vshrl.u32 %v1825, 7
        %v1827 = vsub.s32 %v1824, %v1826
        %v1828 = vrot.slane %v1800, %v1827
        %v1829 = vcombine.low %v1807, %v1814
        %v1830 = vcombine.low %v1821, %v1828
        %v1832 = vunpack.c.l.s4 1966171168
        %v1833 = vunpack.c.0.s8 %v1832
        %v1834 = vlaneseq
        %v1835 = vshrl.u32 %v1834, 7
        %v1836 = vsub.s32 %v1833, %v1835
        %v1837 = vrot.slane %v1829, %v1836
        %v1839 = vunpack.c.l.s4 1966171168
        %v1840 = vunpack.c.0.s8 %v1839
        %v1841 = vlaneseq
        %v1842 = vshrl.u32 %v1841, 7
        %v1843 = vsub.s32 %v1840, %v1842
        %v1844 = vrot.slane %v1830, %v1843
        %v1845 = vcombine.low %v1837, %v1844
        %1848 = vst [vmem:[%s218] ss:$2 sm:$0xff] %v1796
        %s1849 = scalar_lea.vmem %s218, 16 [#allocation2]
        %1850 = vst [vmem:[%s1849] ss:$2 sm:$0xff] %v1845
        %s1851 = scalar_lea.vmem %s218, 1 [#allocation2]
        %1852 = vst [vmem:[%s1851] ss:$2 sm:$0xff] 0.5
        %s1853 = scalar_lea.vmem %s218, 17 [#allocation2]
        %1854 = vst [vmem:[%s1853] ss:$2 sm:$0xff] 0.5
        %s1855 = sand.u32 %s137, 1
        %s1856 = scalar_lea.sflag [#allocation3], %s1855
        %s1857 = sand.u32 %s137, 1
        %s1858 = smul.addr %s1857, 32
        %s1859 = scalar_lea.vmem [#allocation2], %s1858
        // Predicated region
        $region41: #{model_wrapper_forward.1} parent=39 // pred_check
          %p1860 = pneg %p147
        $region42: #{model_wrapper_forward.1} parent=39 // pred_check_branch
          %1862 = sbr.rel (%p1860) target = $region44
        $region43: #{model_wrapper_forward.1} parent=39 // pred_region
          %s1863 = smul.u32 16, %s19
          %s1865 = ssub.s32 512, 512
          %1866 = vsyncadd %s1856, %s1865
          %s1867 = smul.addr %s1863, 32
          %s1868 = scalar_lea.hbm %s5, %s1867
          %s1870 = sshll.u32 %s1859, 4
          %s1871 = int_to_ptr.vmem [resolvable:$true] %s1870
          %1873 = dma.vmem_to_hbm [thread:$0]  %s1871, 512, %s1868, %s1856
        $region44: #{model_wrapper_forward.1} parent=39 // pred_fallthru
          _
      $region40: #{model_wrapper_forward.1} parent=5 // pred_fallthru
        _
      %p1874 = scmp.le.s32.totalorder 2, %s14
      // Predicated region
      $region45: #{model_wrapper_forward.1} parent=5 // pred_check
        %p1875 = pneg %p1874
      $region46: #{model_wrapper_forward.1} parent=5 // pred_check_branch
        %1877 = sbr.rel (%p1875) target = $region48
      $region47: #{model_wrapper_forward.1} parent=5 // pred_region
        %s1878 = ssub.s32 %s14, 2
        // Predicated region
        $region49: #{model_wrapper_forward.1} parent=47 // pred_check
          %p1879 = pneg %p153
        $region50: #{model_wrapper_forward.1} parent=47 // pred_check_branch
          %1881 = sbr.rel (%p1879) target = $region52
        $region51: #{model_wrapper_forward.1} parent=47 // pred_region
          %s1882 = sand.u32 %s138, 1
          %s1883 = scalar_lea.sflag [#allocation3], %s1882
          %s1884 = sand.u32 %s138, 1
          %s1885 = smul.addr %s1884, 32
          %s1886 = scalar_lea.vmem [#allocation2], %s1885
          %1887 = dma.done %s1883, 512
        $region52: #{model_wrapper_forward.1} parent=47 // pred_fallthru
          _
      $region48: #{model_wrapper_forward.1} parent=5 // pred_fallthru
        _
    $region6: #{model_wrapper_forward.1} parent=1 // loop_footer
      %s18 = sadd.s32 1, %s14
    $region7: #{model_wrapper_forward.1} parent=1 // loop_footer_branch
      %13 = sbr.rel target = $region3
    $region8: #{model_wrapper_forward.1} parent=1 // loop_exit
      _
    %1888 = vsyncpa [#allocation3], 1
    %s1889 = scalar_lea.sflag [#allocation3], 1
    %1890 = vsyncpa %s1889, 1

</llo_original>
